<compile_context>
chip_gen: v6e
topology: v6e:2x2x1
jax: 0.10.0
libtpu: 0.0.40
codegen_flags: <defaults>
</compile_context>

<pallas_src>
import jax
import jax.numpy as jnp
from jax.experimental import pallas as pl
from jax.experimental.pallas import tpu as pltpu


LATENT = 128  # lane-dense latent width (multiple of 128)


def _vae_fused_kernel(x_ref, wmu_ref, bmu_ref, wlv_ref, blv_ref, eps_ref,
                      wdec_ref, bdec_ref,
                      xhat_ref, mean_ref, logvar_ref):
    x = x_ref[...]

    # Encoder heads (MXU).
    mean = jnp.dot(x, wmu_ref[...], preferred_element_type=jnp.float32) + bmu_ref[...]
    log_var = jnp.dot(x, wlv_ref[...], preferred_element_type=jnp.float32) + blv_ref[...]

    # torch.clamp(log_var, -30, 30)
    log_var = jnp.clip(log_var, -30.0, 30.0)

    # Reparameterization: z = mean + exp(0.5*log_var) * eps  (rsample branch).
    std = jnp.exp(0.5 * log_var)
    z = mean + std * eps_ref[...]

    # Decoder (MXU).
    x_hat = jnp.dot(z, wdec_ref[...], preferred_element_type=jnp.float32) + bdec_ref[...]

    xhat_ref[...] = x_hat.astype(xhat_ref.dtype)
    mean_ref[...] = mean.astype(mean_ref.dtype)
    logvar_ref[...] = log_var.astype(logvar_ref.dtype)


def vae_forward(x, params, eps):
    """Fused Pallas forward: returns (x_hat, mean, log_var)."""
    w_mu, b_mu, w_lv, b_lv, w_dec, b_dec = params
    orig_shape = x.shape
    B = orig_shape[0]
    din = w_mu.shape[0]
    L = w_mu.shape[1]

    # Contiguous NCHW flatten -> lane-dense (B, C*H*W).
    x2 = x.reshape(B, din)

    # Row tile: largest divisor of B that is <= 256 (no whole-array fallback,
    # keeps double-buffered VMEM small on every chip generation).
    TB = max(d for d in range(1, min(B, 256) + 1) if B % d == 0)
    grid = (B // TB,)

    row_spec_din = pl.BlockSpec((TB, din), lambda i: (i, 0))
    row_spec_lat = pl.BlockSpec((TB, L), lambda i: (i, 0))

    def resident(shape):
        # Weights/biases: same block every grid step -> stay VMEM-resident.
        return pl.BlockSpec(shape, lambda i: (0, 0))

    x_hat2, mean, log_var = pl.pallas_call(
        _vae_fused_kernel,
        out_shape=(
            jax.ShapeDtypeStruct((B, din), x.dtype),
            jax.ShapeDtypeStruct((B, L), x.dtype),
            jax.ShapeDtypeStruct((B, L), x.dtype),
        ),
        grid=grid,
        in_specs=[
            row_spec_din,                                  # x tile
            resident(w_mu.shape), resident(b_mu.shape),    # encoder mean head
            resident(w_lv.shape), resident(b_lv.shape),    # encoder log-var head
            row_spec_lat,                                  # eps tile
            resident(w_dec.shape), resident(b_dec.shape),  # decoder
        ],
        out_specs=(row_spec_din, row_spec_lat, row_spec_lat),
        compiler_params=pltpu.CompilerParams(
            dimension_semantics=("parallel",),
        ),
    )(x2, w_mu, b_mu, w_lv, b_lv, eps, w_dec, b_dec)

    return x_hat2.reshape(orig_shape), mean, log_var


def vae_ref(x, params, eps):
    """Pure-JAX reference for correctness checking."""
    w_mu, b_mu, w_lv, b_lv, w_dec, b_dec = params
    B = x.shape[0]
    x2 = x.reshape(B, -1)
    hi = jax.lax.Precision.HIGHEST
    mean = jnp.dot(x2, w_mu, precision=hi) + b_mu
    log_var = jnp.clip(jnp.dot(x2, w_lv, precision=hi) + b_lv, -30.0, 30.0)
    z = mean + jnp.exp(0.5 * log_var) * eps
    x_hat = jnp.dot(z, w_dec, precision=hi) + b_dec
    return x_hat.reshape(x.shape), mean, log_var


if __name__ == "__main__":
    key = jax.random.PRNGKey(0)
    kx, kmu, klv, kdec, keps = jax.random.split(key, 5)

    # Small NCHW input consistent with a VAE feature map.
    B, C, H, W = 2, 4, 16, 16
    din = C * H * W  # 1024 (multiple of 128 -> lane-dense)

    x = jax.random.normal(kx, (B, C, H, W), dtype=jnp.float32)

    w_mu = jax.random.normal(kmu, (din, LATENT), dtype=jnp.float32) * 0.02
    b_mu = jnp.zeros((1, LATENT), dtype=jnp.float32)
    w_lv = jax.random.normal(klv, (din, LATENT), dtype=jnp.float32) * 0.02
    b_lv = jnp.zeros((1, LATENT), dtype=jnp.float32)
    w_dec = jax.random.normal(kdec, (LATENT, din), dtype=jnp.float32) * 0.02
    b_dec = jnp.zeros((1, din), dtype=jnp.float32)
    params = (w_mu, b_mu, w_lv, b_lv, w_dec, b_dec)

    # rsample noise eps ~ N(0, 1), generated in the wrapper (deterministic).
    eps = jax.random.normal(keps, (B, LATENT), dtype=jnp.float32)

    x_hat, mean, log_var = jax.block_until_ready(vae_forward(x, params, eps))
    x_hat_r, mean_r, log_var_r = vae_ref(x, params, eps)

    assert x_hat.shape == x.shape and x_hat.dtype == x.dtype
    assert mean.shape == (B, LATENT) and log_var.shape == (B, LATENT)
    assert jnp.allclose(mean, mean_r, atol=1e-2, rtol=1e-2)
    assert jnp.allclose(log_var, log_var_r, atol=1e-2, rtol=1e-2)
    assert jnp.allclose(x_hat, x_hat_r, atol=1e-2, rtol=1e-2)

    print("KERNEL_OK")
</pallas_src>

<mosaic_0001>
module attributes {stable_mosaic.version = 11 : i64} {
  func.func @_vae_fused_kernel(%arg0: i32, %arg1: memref<2x1024xf32, #tpu.memory_space<vmem>>, %arg2: memref<1024x128xf32, #tpu.memory_space<vmem>>, %arg3: memref<1x128xf32, #tpu.memory_space<vmem>>, %arg4: memref<1024x128xf32, #tpu.memory_space<vmem>>, %arg5: memref<1x128xf32, #tpu.memory_space<vmem>>, %arg6: memref<2x128xf32, #tpu.memory_space<vmem>>, %arg7: memref<128x1024xf32, #tpu.memory_space<vmem>>, %arg8: memref<1x1024xf32, #tpu.memory_space<vmem>>, %arg9: memref<2x1024xf32, #tpu.memory_space<vmem>>, %arg10: memref<2x128xf32, #tpu.memory_space<vmem>>, %arg11: memref<2x128xf32, #tpu.memory_space<vmem>>) attributes {dimension_semantics = [#tpu.dimension_semantics<parallel>], iteration_bounds = array<i64: 1>, scalar_prefetch = 0 : i64, scratch_operands = 0 : i64, tpu.core_type = #tpu.core_type<tc>, window_params = [{transform_indices = @transform_0, window_bounds = array<i64: 2, 1024>}, {pipeline_mode = #tpu.pipeline_mode<synchronous>, transform_indices = @transform_1, window_bounds = array<i64: 1024, 128>}, {pipeline_mode = #tpu.pipeline_mode<synchronous>, transform_indices = @transform_2, window_bounds = array<i64: 1, 128>}, {pipeline_mode = #tpu.pipeline_mode<synchronous>, transform_indices = @transform_3, window_bounds = array<i64: 1024, 128>}, {pipeline_mode = #tpu.pipeline_mode<synchronous>, transform_indices = @transform_4, window_bounds = array<i64: 1, 128>}, {transform_indices = @transform_5, window_bounds = array<i64: 2, 128>}, {pipeline_mode = #tpu.pipeline_mode<synchronous>, transform_indices = @transform_6, window_bounds = array<i64: 128, 1024>}, {pipeline_mode = #tpu.pipeline_mode<synchronous>, transform_indices = @transform_7, window_bounds = array<i64: 1, 1024>}, {transform_indices = @transform_8, window_bounds = array<i64: 2, 1024>}, {transform_indices = @transform_9, window_bounds = array<i64: 2, 128>}, {transform_indices = @transform_10, window_bounds = array<i64: 2, 128>}]} {
    %c0 = arith.constant 0 : index
    %c0_0 = arith.constant 0 : index
    %0 = vector.load %arg1[%c0, %c0_0] : memref<2x1024xf32, #tpu.memory_space<vmem>>, vector<2x1024xf32>
    %c0_1 = arith.constant 0 : index
    %c0_2 = arith.constant 0 : index
    %1 = vector.load %arg2[%c0_1, %c0_2] : memref<1024x128xf32, #tpu.memory_space<vmem>>, vector<1024x128xf32>
    %cst = arith.constant dense<0.000000e+00> : vector<2x128xf32>
    %2 = tpu.matmul %0, %1, %cst {dimension_numbers = #tpu.dot_dimension_numbers<[1], [0], [0], [1], [0, 0, 1, 1], [], []>} : vector<2x1024xf32>, vector<1024x128xf32>, vector<2x128xf32> -> vector<2x128xf32>
    %c0_3 = arith.constant 0 : index
    %c0_4 = arith.constant 0 : index
    %3 = vector.load %arg3[%c0_3, %c0_4] : memref<1x128xf32, #tpu.memory_space<vmem>>, vector<1x128xf32>
    %4 = vector.broadcast %3 : vector<1x128xf32> to vector<2x128xf32>
    %5 = arith.addf %2, %4 : vector<2x128xf32>
    %c0_5 = arith.constant 0 : index
    %c0_6 = arith.constant 0 : index
    %6 = vector.load %arg4[%c0_5, %c0_6] : memref<1024x128xf32, #tpu.memory_space<vmem>>, vector<1024x128xf32>
    %cst_7 = arith.constant dense<0.000000e+00> : vector<2x128xf32>
    %7 = tpu.matmul %0, %6, %cst_7 {dimension_numbers = #tpu.dot_dimension_numbers<[1], [0], [0], [1], [0, 0, 1, 1], [], []>} : vector<2x1024xf32>, vector<1024x128xf32>, vector<2x128xf32> -> vector<2x128xf32>
    %c0_8 = arith.constant 0 : index
    %c0_9 = arith.constant 0 : index
    %8 = vector.load %arg5[%c0_8, %c0_9] : memref<1x128xf32, #tpu.memory_space<vmem>>, vector<1x128xf32>
    %9 = vector.broadcast %8 : vector<1x128xf32> to vector<2x128xf32>
    %10 = arith.addf %7, %9 : vector<2x128xf32>
    %cst_10 = arith.constant -3.000000e+01 : f32
    %cst_11 = arith.constant 3.000000e+01 : f32
    %11 = vector.broadcast %cst_10 : f32 to vector<2x128xf32>
    %12 = arith.maximumf %11, %10 : vector<2x128xf32>
    %13 = vector.broadcast %cst_11 : f32 to vector<2x128xf32>
    %14 = arith.minimumf %13, %12 : vector<2x128xf32>
    %cst_12 = arith.constant 5.000000e-01 : f32
    %15 = vector.broadcast %cst_12 : f32 to vector<2x128xf32>
    %16 = arith.mulf %15, %14 : vector<2x128xf32>
    %17 = math.exp %16 : vector<2x128xf32>
    %c0_13 = arith.constant 0 : index
    %c0_14 = arith.constant 0 : index
    %18 = vector.load %arg6[%c0_13, %c0_14] : memref<2x128xf32, #tpu.memory_space<vmem>>, vector<2x128xf32>
    %19 = arith.mulf %17, %18 : vector<2x128xf32>
    %20 = arith.addf %5, %19 : vector<2x128xf32>
    %c0_15 = arith.constant 0 : index
    %c0_16 = arith.constant 0 : index
    %21 = vector.load %arg7[%c0_15, %c0_16] : memref<128x1024xf32, #tpu.memory_space<vmem>>, vector<128x1024xf32>
    %cst_17 = arith.constant dense<0.000000e+00> : vector<2x1024xf32>
    %22 = tpu.matmul %20, %21, %cst_17 {dimension_numbers = #tpu.dot_dimension_numbers<[1], [0], [0], [1], [0, 0, 1, 1], [], []>} : vector<2x128xf32>, vector<128x1024xf32>, vector<2x1024xf32> -> vector<2x1024xf32>
    %c0_18 = arith.constant 0 : index
    %c0_19 = arith.constant 0 : index
    %23 = vector.load %arg8[%c0_18, %c0_19] : memref<1x1024xf32, #tpu.memory_space<vmem>>, vector<1x1024xf32>
    %24 = vector.broadcast %23 : vector<1x1024xf32> to vector<2x1024xf32>
    %25 = arith.addf %22, %24 : vector<2x1024xf32>
    %c0_20 = arith.constant 0 : index
    %c0_21 = arith.constant 0 : index
    %26 = vector.load %arg9[%c0_20, %c0_21] : memref<2x1024xf32, #tpu.memory_space<vmem>>, vector<2x1024xf32>
    tpu.vector_store %arg9[%c0_20, %c0_21], %25 {strides = array<i32>} : memref<2x1024xf32, #tpu.memory_space<vmem>>, vector<2x1024xf32>,
    %c0_22 = arith.constant 0 : index
    %c0_23 = arith.constant 0 : index
    %27 = vector.load %arg10[%c0_22, %c0_23] : memref<2x128xf32, #tpu.memory_space<vmem>>, vector<2x128xf32>
    tpu.vector_store %arg10[%c0_22, %c0_23], %5 {strides = array<i32>} : memref<2x128xf32, #tpu.memory_space<vmem>>, vector<2x128xf32>,
    %c0_24 = arith.constant 0 : index
    %c0_25 = arith.constant 0 : index
    %28 = vector.load %arg11[%c0_24, %c0_25] : memref<2x128xf32, #tpu.memory_space<vmem>>, vector<2x128xf32>
    tpu.vector_store %arg11[%c0_24, %c0_25], %14 {strides = array<i32>} : memref<2x128xf32, #tpu.memory_space<vmem>>, vector<2x128xf32>,
    return
  }
  func.func @transform_0(%arg0: i32) -> (i32, i32) {
    %c0_i32 = arith.constant 0 : i32
    %c0_i32_0 = arith.constant 0 : i32
    return %arg0, %c0_i32 : i32, i32
  }
  func.func @transform_1(%arg0: i32) -> (i32, i32) {
    %c0_i32 = arith.constant 0 : i32
    %c0_i32_0 = arith.constant 0 : i32
    %c0_i32_1 = arith.constant 0 : i32
    return %c0_i32, %c0_i32_0 : i32, i32
  }
  func.func @transform_2(%arg0: i32) -> (i32, i32) {
    %c0_i32 = arith.constant 0 : i32
    %c0_i32_0 = arith.constant 0 : i32
    %c0_i32_1 = arith.constant 0 : i32
    return %c0_i32, %c0_i32_0 : i32, i32
  }
  func.func @transform_3(%arg0: i32) -> (i32, i32) {
    %c0_i32 = arith.constant 0 : i32
    %c0_i32_0 = arith.constant 0 : i32
    %c0_i32_1 = arith.constant 0 : i32
    return %c0_i32, %c0_i32_0 : i32, i32
  }
  func.func @transform_4(%arg0: i32) -> (i32, i32) {
    %c0_i32 = arith.constant 0 : i32
    %c0_i32_0 = arith.constant 0 : i32
    %c0_i32_1 = arith.constant 0 : i32
    return %c0_i32, %c0_i32_0 : i32, i32
  }
  func.func @transform_5(%arg0: i32) -> (i32, i32) {
    %c0_i32 = arith.constant 0 : i32
    %c0_i32_0 = arith.constant 0 : i32
    return %arg0, %c0_i32 : i32, i32
  }
  func.func @transform_6(%arg0: i32) -> (i32, i32) {
    %c0_i32 = arith.constant 0 : i32
    %c0_i32_0 = arith.constant 0 : i32
    %c0_i32_1 = arith.constant 0 : i32
    return %c0_i32, %c0_i32_0 : i32, i32
  }
  func.func @transform_7(%arg0: i32) -> (i32, i32) {
    %c0_i32 = arith.constant 0 : i32
    %c0_i32_0 = arith.constant 0 : i32
    %c0_i32_1 = arith.constant 0 : i32
    return %c0_i32, %c0_i32_0 : i32, i32
  }
  func.func @transform_8(%arg0: i32) -> (i32, i32) {
    %c0_i32 = arith.constant 0 : i32
    %c0_i32_0 = arith.constant 0 : i32
    return %arg0, %c0_i32 : i32, i32
  }
  func.func @transform_9(%arg0: i32) -> (i32, i32) {
    %c0_i32 = arith.constant 0 : i32
    %c0_i32_0 = arith.constant 0 : i32
    return %arg0, %c0_i32 : i32, i32
  }
  func.func @transform_10(%arg0: i32) -> (i32, i32) {
    %c0_i32 = arith.constant 0 : i32
    %c0_i32_0 = arith.constant 0 : i32
    return %arg0, %c0_i32 : i32, i32
  }
}

</mosaic_0001>

<llo_original>
// kernel: tpu_custom_call.1
$region0: #{tpu_custom_call.1}
  #allocation0 [shape = 'u32[]', space=smem, size = 0x4, offset = 0x4, fixed_abs, tag = 'smem constant byte address 0x4 - core index']
  #allocation1 [shape = 'u32[144,128]{1,0:T(1,128)}', space=vmem, size = 0x12000, scoped, tag = 'internal scratch']
  %s0 = inlined_call_operand.hbm [shape: f32[2,1024], index: 0, kind: input, shape index: {}]
  %s1 = inlined_call_operand.hbm [shape: f32[1024,128], index: 1, kind: input, shape index: {}]
  %s2 = inlined_call_operand.vmem [shape: f32[1,128], index: 2, kind: input, shape index: {}]
  %s3 = inlined_call_operand.hbm [shape: f32[1024,128], index: 3, kind: input, shape index: {}]
  %s4 = inlined_call_operand.vmem [shape: f32[1,128], index: 4, kind: input, shape index: {}]
  %s5 = inlined_call_operand.vmem [shape: f32[2,128], index: 5, kind: input, shape index: {}]
  %s6 = inlined_call_operand.hbm [shape: f32[128,1024], index: 6, kind: input, shape index: {}]
  %s7 = inlined_call_operand.vmem [shape: f32[1,1024], index: 7, kind: input, shape index: {}]
  %s8 = inlined_call_operand.hbm [shape: f32[2,1024], index: 8, kind: output, shape index: {0}]
  %s9 = inlined_call_operand.hbm [shape: f32[2,128], index: 9, kind: output, shape index: {1}]
  %s10 = inlined_call_operand.hbm [shape: f32[2,128], index: 10, kind: output, shape index: {2}]
  %11 = xla_tuple %s8, %s9, %s10
  %s12 = sld [smem:[#allocation0]]
  $region74: #{tpu_custom_call.1} parent=0
    _
  %s14 = ssub.s32 1, %s12
  %s15 = scalar_select 0, %s14, %s12
  $region1: #{tpu_custom_call.1} parent=0
    #allocation2 [shape = 'u8[8192]{0}', space=vmem, size = 0x2000, scoped, tag = 'input window, operand 0, single buffered']
    #allocation3 [shape = 's32[1]{0}', space=sflag, size = 0x4, scoped, tag = 'scoped memory for tpu_custom_call.1']
    #allocation4 [shape = 's32[1]{0}', space=sflag, size = 0x4, scoped, tag = 'scoped memory for tpu_custom_call.1']
    #allocation5 [shape = 'u8[524288]{0}', space=vmem, size = 0x80000, scoped, tag = 'input window, operand 1, single buffered']
    #allocation6 [shape = 's32[1]{0}', space=sflag, size = 0x4, scoped, tag = 'scoped memory for tpu_custom_call.1']
    #allocation7 [shape = 'u8[524288]{0}', space=vmem, size = 0x80000, scoped, tag = 'input window, operand 3, single buffered']
    #allocation8 [shape = 'u8[524288]{0}', space=vmem, size = 0x80000, scoped, tag = 'input window, operand 6, single buffered']
    #allocation9 [shape = 's32[1]{0}', space=sflag, size = 0x4, scoped, tag = 'scoped memory for tpu_custom_call.1']
    #allocation10 [shape = 'u8[8192]{0}', space=vmem, size = 0x2000, scoped, tag = 'output window, operand 0, single buffered']
    #allocation11 [shape = 'u8[1024]{0}', space=vmem, size = 0x400, scoped, tag = 'output window, operand 1, single buffered']
    #allocation12 [shape = 's32[1]{0}', space=sflag, size = 0x4, scoped, tag = 'scoped memory for tpu_custom_call.1']
    #allocation13 [shape = 'u8[1024]{0}', space=vmem, size = 0x400, scoped, tag = 'output window, operand 2, single buffered']
    %16 = vsyncpa [#allocation3], 0
    %17 = vsyncpa [#allocation6], 0
    %18 = vsyncpa [#allocation9], 0
    %19 = vsyncpa [#allocation4], 0
    %20 = vsyncpa [#allocation12], 0
    // Predicated region
    $region2: #{tpu_custom_call.1} parent=1 // pred_check
      _
    $region3: #{tpu_custom_call.1} parent=1 // pred_check_branch
      %22 = sbr.rel (0) target = $region5
    $region4: #{tpu_custom_call.1} parent=1 // pred_region
      %s24 = ssub.s32 256, 256
      %25 = vsyncadd [#allocation3], %s24
      %s27 = sshll.u32 [#allocation2], 4
      %s28 = int_to_ptr.vmem [resolvable:$true] %s27
      %30 = dma.hbm_to_vmem [thread:$0]  %s0, 256, %s28, [#allocation3]
    $region5: #{tpu_custom_call.1} parent=1 // pred_fallthru
      _
    // Predicated region
    $region6: #{tpu_custom_call.1} parent=1 // pred_check
      _
    $region7: #{tpu_custom_call.1} parent=1 // pred_check_branch
      %32 = sbr.rel (0) target = $region9
    $region8: #{tpu_custom_call.1} parent=1 // pred_region
      %s34 = ssub.s32 16384, 16384
      %35 = vsyncadd [#allocation6], %s34
      %s36 = sshll.u32 [#allocation5], 4
      %s37 = int_to_ptr.vmem [resolvable:$true] %s36
      %42 = dma.hbm_to_vmem [thread:$0]  %s1, 16384, %s37, [#allocation6], 128, 128, 8
    $region9: #{tpu_custom_call.1} parent=1 // pred_fallthru
      _
    // Predicated region
    $region10: #{tpu_custom_call.1} parent=1 // pred_check
      _
    $region11: #{tpu_custom_call.1} parent=1 // pred_check_branch
      %44 = sbr.rel (0) target = $region13
    $region12: #{tpu_custom_call.1} parent=1 // pred_region
      _
    $region13: #{tpu_custom_call.1} parent=1 // pred_fallthru
      _
    // Predicated region
    $region14: #{tpu_custom_call.1} parent=1 // pred_check
      _
    $region15: #{tpu_custom_call.1} parent=1 // pred_check_branch
      %46 = sbr.rel (0) target = $region17
    $region16: #{tpu_custom_call.1} parent=1 // pred_region
      %s48 = ssub.s32 16384, 16384
      %49 = vsyncadd [#allocation6], %s48
      %s50 = sshll.u32 [#allocation7], 4
      %s51 = int_to_ptr.vmem [resolvable:$true] %s50
      %56 = dma.hbm_to_vmem [thread:$0]  %s3, 16384, %s51, [#allocation6], 128, 128, 8
    $region17: #{tpu_custom_call.1} parent=1 // pred_fallthru
      _
    // Predicated region
    $region18: #{tpu_custom_call.1} parent=1 // pred_check
      _
    $region19: #{tpu_custom_call.1} parent=1 // pred_check_branch
      %58 = sbr.rel (0) target = $region21
    $region20: #{tpu_custom_call.1} parent=1 // pred_region
      _
    $region21: #{tpu_custom_call.1} parent=1 // pred_fallthru
      _
    // Predicated region
    $region22: #{tpu_custom_call.1} parent=1 // pred_check
      _
    $region23: #{tpu_custom_call.1} parent=1 // pred_check_branch
      %60 = sbr.rel (0) target = $region25
    $region24: #{tpu_custom_call.1} parent=1 // pred_region
      _
    $region25: #{tpu_custom_call.1} parent=1 // pred_fallthru
      _
    // Predicated region
    $region26: #{tpu_custom_call.1} parent=1 // pred_check
      _
    $region27: #{tpu_custom_call.1} parent=1 // pred_check_branch
      %62 = sbr.rel (0) target = $region29
    $region28: #{tpu_custom_call.1} parent=1 // pred_region
      %s64 = ssub.s32 16384, 16384
      %65 = vsyncadd [#allocation9], %s64
      %s66 = sshll.u32 [#allocation8], 4
      %s67 = int_to_ptr.vmem [resolvable:$true] %s66
      %72 = dma.hbm_to_vmem [thread:$0]  %s6, 16384, %s67, [#allocation9], 1024, 1024, 64
    $region29: #{tpu_custom_call.1} parent=1 // pred_fallthru
      _
    // Predicated region
    $region30: #{tpu_custom_call.1} parent=1 // pred_check
      _
    $region31: #{tpu_custom_call.1} parent=1 // pred_check_branch
      %74 = sbr.rel (0) target = $region33
    $region32: #{tpu_custom_call.1} parent=1 // pred_region
      _
    $region33: #{tpu_custom_call.1} parent=1 // pred_fallthru
      _
    // Predicated region
    $region34: #{tpu_custom_call.1} parent=1 // pred_check
      _
    $region35: #{tpu_custom_call.1} parent=1 // pred_check_branch
      %76 = sbr.rel (0) target = $region37
    $region36: #{tpu_custom_call.1} parent=1 // pred_region
      %77 = dma.done [#allocation3], 256
    $region37: #{tpu_custom_call.1} parent=1 // pred_fallthru
      _
    // Predicated region
    $region38: #{tpu_custom_call.1} parent=1 // pred_check
      _
    $region39: #{tpu_custom_call.1} parent=1 // pred_check_branch
      %79 = sbr.rel (0) target = $region41
    $region40: #{tpu_custom_call.1} parent=1 // pred_region
      %80 = dma.done [#allocation6], 16384
    $region41: #{tpu_custom_call.1} parent=1 // pred_fallthru
      _
    // Predicated region
    $region42: #{tpu_custom_call.1} parent=1 // pred_check
      _
    $region43: #{tpu_custom_call.1} parent=1 // pred_check_branch
      %82 = sbr.rel (0) target = $region45
    $region44: #{tpu_custom_call.1} parent=1 // pred_region
      %83 = dma.done [#allocation6], 16384
    $region45: #{tpu_custom_call.1} parent=1 // pred_fallthru
      _
    // Predicated region
    $region46: #{tpu_custom_call.1} parent=1 // pred_check
      _
    $region47: #{tpu_custom_call.1} parent=1 // pred_check_branch
      %85 = sbr.rel (0) target = $region49
    $region48: #{tpu_custom_call.1} parent=1 // pred_region
      %86 = dma.done [#allocation9], 16384
    $region49: #{tpu_custom_call.1} parent=1 // pred_fallthru
      _
    %v87 = vld [vmem:[#allocation2] sm:$0xff]
    %v88 = vld [vmem:[#allocation2 + $0x8] sm:$0xff]
    %v89 = vld [vmem:[#allocation5] sm:$0xff]
    %v90 = vld [vmem:[#allocation5 + $0x8] sm:$0xff]
    %v91 = vld [vmem:[#allocation5 + $0x10] sm:$0xff]
    %v92 = vld [vmem:[#allocation5 + $0x18] sm:$0xff]
    %v93 = vld [vmem:[#allocation5 + $0x20] sm:$0xff]
    %v94 = vld [vmem:[#allocation5 + $0x28] sm:$0xff]
    %v95 = vld [vmem:[#allocation5 + $0x30] sm:$0xff]
    %v96 = vld [vmem:[#allocation5 + $0x38] sm:$0xff]
    %v97 = vld [vmem:[#allocation5 + $0x40] sm:$0xff]
    %v98 = vld [vmem:[#allocation5 + $0x48] sm:$0xff]
    %v99 = vld [vmem:[#allocation5 + $0x50] sm:$0xff]
    %v100 = vld [vmem:[#allocation5 + $0x58] sm:$0xff]
    %v101 = vld [vmem:[#allocation5 + $0x60] sm:$0xff]
    %v102 = vld [vmem:[#allocation5 + $0x68] sm:$0xff]
    %v103 = vld [vmem:[#allocation5 + $0x70] sm:$0xff]
    %v104 = vld [vmem:[#allocation5 + $0x78] sm:$0xff]
    %v105 = vld [vmem:[#allocation5 + $0x80] sm:$0xff]
    %v106 = vld [vmem:[#allocation5 + $0x88] sm:$0xff]
    %v107 = vld [vmem:[#allocation5 + $0x90] sm:$0xff]
    %v108 = vld [vmem:[#allocation5 + $0x98] sm:$0xff]
    %v109 = vld [vmem:[#allocation5 + $0xa0] sm:$0xff]
    %v110 = vld [vmem:[#allocation5 + $0xa8] sm:$0xff]
    %v111 = vld [vmem:[#allocation5 + $0xb0] sm:$0xff]
    %v112 = vld [vmem:[#allocation5 + $0xb8] sm:$0xff]
    %v113 = vld [vmem:[#allocation5 + $0xc0] sm:$0xff]
    %v114 = vld [vmem:[#allocation5 + $0xc8] sm:$0xff]
    %v115 = vld [vmem:[#allocation5 + $0xd0] sm:$0xff]
    %v116 = vld [vmem:[#allocation5 + $0xd8] sm:$0xff]
    %v117 = vld [vmem:[#allocation5 + $0xe0] sm:$0xff]
    %v118 = vld [vmem:[#allocation5 + $0xe8] sm:$0xff]
    %v119 = vld [vmem:[#allocation5 + $0xf0] sm:$0xff]
    %v120 = vld [vmem:[#allocation5 + $0xf8] sm:$0xff]
    %v121 = vld [vmem:[#allocation5 + $0x100] sm:$0xff]
    %v122 = vld [vmem:[#allocation5 + $0x108] sm:$0xff]
    %v123 = vld [vmem:[#allocation5 + $0x110] sm:$0xff]
    %v124 = vld [vmem:[#allocation5 + $0x118] sm:$0xff]
    %v125 = vld [vmem:[#allocation5 + $0x120] sm:$0xff]
    %v126 = vld [vmem:[#allocation5 + $0x128] sm:$0xff]
    %v127 = vld [vmem:[#allocation5 + $0x130] sm:$0xff]
    %v128 = vld [vmem:[#allocation5 + $0x138] sm:$0xff]
    %v129 = vld [vmem:[#allocation5 + $0x140] sm:$0xff]
    %v130 = vld [vmem:[#allocation5 + $0x148] sm:$0xff]
    %v131 = vld [vmem:[#allocation5 + $0x150] sm:$0xff]
    %v132 = vld [vmem:[#allocation5 + $0x158] sm:$0xff]
    %v133 = vld [vmem:[#allocation5 + $0x160] sm:$0xff]
    %v134 = vld [vmem:[#allocation5 + $0x168] sm:$0xff]
    %v135 = vld [vmem:[#allocation5 + $0x170] sm:$0xff]
    %v136 = vld [vmem:[#allocation5 + $0x178] sm:$0xff]
    %v137 = vld [vmem:[#allocation5 + $0x180] sm:$0xff]
    %v138 = vld [vmem:[#allocation5 + $0x188] sm:$0xff]
    %v139 = vld [vmem:[#allocation5 + $0x190] sm:$0xff]
    %v140 = vld [vmem:[#allocation5 + $0x198] sm:$0xff]
    %v141 = vld [vmem:[#allocation5 + $0x1a0] sm:$0xff]
    %v142 = vld [vmem:[#allocation5 + $0x1a8] sm:$0xff]
    %v143 = vld [vmem:[#allocation5 + $0x1b0] sm:$0xff]
    %v144 = vld [vmem:[#allocation5 + $0x1b8] sm:$0xff]
    %v145 = vld [vmem:[#allocation5 + $0x1c0] sm:$0xff]
    %v146 = vld [vmem:[#allocation5 + $0x1c8] sm:$0xff]
    %v147 = vld [vmem:[#allocation5 + $0x1d0] sm:$0xff]
    %v148 = vld [vmem:[#allocation5 + $0x1d8] sm:$0xff]
    %v149 = vld [vmem:[#allocation5 + $0x1e0] sm:$0xff]
    %v150 = vld [vmem:[#allocation5 + $0x1e8] sm:$0xff]
    %v151 = vld [vmem:[#allocation5 + $0x1f0] sm:$0xff]
    %v152 = vld [vmem:[#allocation5 + $0x1f8] sm:$0xff]
    %v153 = vld [vmem:[#allocation5 + $0x200] sm:$0xff]
    %v154 = vld [vmem:[#allocation5 + $0x208] sm:$0xff]
    %v155 = vld [vmem:[#allocation5 + $0x210] sm:$0xff]
    %v156 = vld [vmem:[#allocation5 + $0x218] sm:$0xff]
    %v157 = vld [vmem:[#allocation5 + $0x220] sm:$0xff]
    %v158 = vld [vmem:[#allocation5 + $0x228] sm:$0xff]
    %v159 = vld [vmem:[#allocation5 + $0x230] sm:$0xff]
    %v160 = vld [vmem:[#allocation5 + $0x238] sm:$0xff]
    %v161 = vld [vmem:[#allocation5 + $0x240] sm:$0xff]
    %v162 = vld [vmem:[#allocation5 + $0x248] sm:$0xff]
    %v163 = vld [vmem:[#allocation5 + $0x250] sm:$0xff]
    %v164 = vld [vmem:[#allocation5 + $0x258] sm:$0xff]
    %v165 = vld [vmem:[#allocation5 + $0x260] sm:$0xff]
    %v166 = vld [vmem:[#allocation5 + $0x268] sm:$0xff]
    %v167 = vld [vmem:[#allocation5 + $0x270] sm:$0xff]
    %v168 = vld [vmem:[#allocation5 + $0x278] sm:$0xff]
    %v169 = vld [vmem:[#allocation5 + $0x280] sm:$0xff]
    %v170 = vld [vmem:[#allocation5 + $0x288] sm:$0xff]
    %v171 = vld [vmem:[#allocation5 + $0x290] sm:$0xff]
    %v172 = vld [vmem:[#allocation5 + $0x298] sm:$0xff]
    %v173 = vld [vmem:[#allocation5 + $0x2a0] sm:$0xff]
    %v174 = vld [vmem:[#allocation5 + $0x2a8] sm:$0xff]
    %v175 = vld [vmem:[#allocation5 + $0x2b0] sm:$0xff]
    %v176 = vld [vmem:[#allocation5 + $0x2b8] sm:$0xff]
    %v177 = vld [vmem:[#allocation5 + $0x2c0] sm:$0xff]
    %v178 = vld [vmem:[#allocation5 + $0x2c8] sm:$0xff]
    %v179 = vld [vmem:[#allocation5 + $0x2d0] sm:$0xff]
    %v180 = vld [vmem:[#allocation5 + $0x2d8] sm:$0xff]
    %v181 = vld [vmem:[#allocation5 + $0x2e0] sm:$0xff]
    %v182 = vld [vmem:[#allocation5 + $0x2e8] sm:$0xff]
    %v183 = vld [vmem:[#allocation5 + $0x2f0] sm:$0xff]
    %v184 = vld [vmem:[#allocation5 + $0x2f8] sm:$0xff]
    %v185 = vld [vmem:[#allocation5 + $0x300] sm:$0xff]
    %v186 = vld [vmem:[#allocation5 + $0x308] sm:$0xff]
    %v187 = vld [vmem:[#allocation5 + $0x310] sm:$0xff]
    %v188 = vld [vmem:[#allocation5 + $0x318] sm:$0xff]
    %v189 = vld [vmem:[#allocation5 + $0x320] sm:$0xff]
    %v190 = vld [vmem:[#allocation5 + $0x328] sm:$0xff]
    %v191 = vld [vmem:[#allocation5 + $0x330] sm:$0xff]
    %v192 = vld [vmem:[#allocation5 + $0x338] sm:$0xff]
    %v193 = vld [vmem:[#allocation5 + $0x340] sm:$0xff]
    %v194 = vld [vmem:[#allocation5 + $0x348] sm:$0xff]
    %v195 = vld [vmem:[#allocation5 + $0x350] sm:$0xff]
    %v196 = vld [vmem:[#allocation5 + $0x358] sm:$0xff]
    %v197 = vld [vmem:[#allocation5 + $0x360] sm:$0xff]
    %v198 = vld [vmem:[#allocation5 + $0x368] sm:$0xff]
    %v199 = vld [vmem:[#allocation5 + $0x370] sm:$0xff]
    %v200 = vld [vmem:[#allocation5 + $0x378] sm:$0xff]
    %v201 = vld [vmem:[#allocation5 + $0x380] sm:$0xff]
    %v202 = vld [vmem:[#allocation5 + $0x388] sm:$0xff]
    %v203 = vld [vmem:[#allocation5 + $0x390] sm:$0xff]
    %v204 = vld [vmem:[#allocation5 + $0x398] sm:$0xff]
    %v205 = vld [vmem:[#allocation5 + $0x3a0] sm:$0xff]
    %v206 = vld [vmem:[#allocation5 + $0x3a8] sm:$0xff]
    %v207 = vld [vmem:[#allocation5 + $0x3b0] sm:$0xff]
    %v208 = vld [vmem:[#allocation5 + $0x3b8] sm:$0xff]
    %v209 = vld [vmem:[#allocation5 + $0x3c0] sm:$0xff]
    %v210 = vld [vmem:[#allocation5 + $0x3c8] sm:$0xff]
    %v211 = vld [vmem:[#allocation5 + $0x3d0] sm:$0xff]
    %v212 = vld [vmem:[#allocation5 + $0x3d8] sm:$0xff]
    %v213 = vld [vmem:[#allocation5 + $0x3e0] sm:$0xff]
    %v214 = vld [vmem:[#allocation5 + $0x3e8] sm:$0xff]
    %v215 = vld [vmem:[#allocation5 + $0x3f0] sm:$0xff]
    %v216 = vld [vmem:[#allocation5 + $0x3f8] sm:$0xff]
    %v217 = vld [vmem:[%s2] sm:$0x1]
    %v219 = vlaneseq
    %v220 = vshrl.u32 %v219, 7
    %v221 = vsub.s32 0, %v220
    %v222 = vrot.slane %v217, %v221
    %v226 = vcombine.high %v87, %v87
    %v228 = vunpack.c.l.s4 1983009808
    %v229 = vunpack.c.0.s8 %v228
    %v230 = vlaneseq
    %v231 = vshrl.u32 %v230, 7
    %v232 = vsub.s32 %v229, %v231
    %v233 = vrot.slane %v87, %v232
    %v235 = vunpack.c.l.s4 1983009808
    %v236 = vunpack.c.0.s8 %v235
    %v237 = vlaneseq
    %v238 = vshrl.u32 %v237, 7
    %v239 = vsub.s32 %v236, %v238
    %v240 = vrot.slane %v226, %v239
    %v241 = vcombine.high %v233, %v233
    %v242 = vcombine.high %v240, %v240
    %v243 = vcombine.high %v88, %v88
    %v245 = vunpack.c.l.s4 1983009808
    %v246 = vunpack.c.0.s8 %v245
    %v247 = vlaneseq
    %v248 = vshrl.u32 %v247, 7
    %v249 = vsub.s32 %v246, %v248
    %v250 = vrot.slane %v88, %v249
    %v252 = vunpack.c.l.s4 1983009808
    %v253 = vunpack.c.0.s8 %v252
    %v254 = vlaneseq
    %v255 = vshrl.u32 %v254, 7
    %v256 = vsub.s32 %v253, %v255
    %v257 = vrot.slane %v243, %v256
    %v258 = vcombine.high %v250, %v250
    %v259 = vcombine.high %v257, %v257
    %268 = vmatprep.subr.mxu0 0.0
    %269 = vmatpush1.msra.mxu0 %v104
    %270 = vmatprep.subr.mxu0 0.0
    %271 = vmatpush1.msra.mxu0 %v103
    %272 = vmatprep.subr.mxu0 0.0
    %273 = vmatpush1.msra.mxu0 %v102
    %274 = vmatprep.subr.mxu0 0.0
    %275 = vmatpush1.msra.mxu0 %v101
    %276 = vmatprep.subr.mxu0 0.0
    %277 = vmatpush1.msra.mxu0 %v100
    %278 = vmatprep.subr.mxu0 0.0
    %279 = vmatpush1.msra.mxu0 %v99
    %280 = vmatprep.subr.mxu0 0.0
    %281 = vmatpush1.msra.mxu0 %v98
    %282 = vmatprep.subr.mxu0 0.0
    %283 = vmatpush1.msra.mxu0 %v97
    %284 = vmatprep.subr.mxu0 0.0
    %285 = vmatpush1.msra.mxu0 %v96
    %286 = vmatprep.subr.mxu0 0.0
    %287 = vmatpush1.msra.mxu0 %v95
    %288 = vmatprep.subr.mxu0 0.0
    %289 = vmatpush1.msra.mxu0 %v94
    %290 = vmatprep.subr.mxu0 0.0
    %291 = vmatpush1.msra.mxu0 %v93
    %292 = vmatprep.subr.mxu0 0.0
    %293 = vmatpush1.msra.mxu0 %v92
    %294 = vmatprep.subr.mxu0 0.0
    %295 = vmatpush1.msra.mxu0 %v91
    %296 = vmatprep.subr.mxu0 0.0
    %297 = vmatpush1.msra.mxu0 %v90
    %298 = vmatprep.subr.mxu0 0.0
    %299 = vmatpush1.msra.mxu0 %v89
    %300 = vmatprep.subr.mxu0 0.0
    %301 = vmatpush2.msra.mxu0 %v120
    %302 = vmatprep.subr.mxu0 0.0
    %303 = vmatpush2.msra.mxu0 %v119
    %304 = vmatprep.subr.mxu0 0.0
    %305 = vmatpush2.msra.mxu0 %v118
    %306 = vmatprep.subr.mxu0 0.0
    %307 = vmatpush2.msra.mxu0 %v117
    %308 = vmatprep.subr.mxu0 0.0
    %309 = vmatpush2.msra.mxu0 %v116
    %310 = vmatprep.subr.mxu0 0.0
    %311 = vmatpush2.msra.mxu0 %v115
    %312 = vmatprep.subr.mxu0 0.0
    %313 = vmatpush2.msra.mxu0 %v114
    %314 = vmatprep.subr.mxu0 0.0
    %315 = vmatpush2.msra.mxu0 %v113
    %316 = vmatprep.subr.mxu0 0.0
    %317 = vmatpush2.msra.mxu0 %v112
    %318 = vmatprep.subr.mxu0 0.0
    %319 = vmatpush2.msra.mxu0 %v111
    %320 = vmatprep.subr.mxu0 0.0
    %321 = vmatpush2.msra.mxu0 %v110
    %322 = vmatprep.subr.mxu0 0.0
    %323 = vmatpush2.msra.mxu0 %v109
    %324 = vmatprep.subr.mxu0 0.0
    %325 = vmatpush2.msra.mxu0 %v108
    %326 = vmatprep.subr.mxu0 0.0
    %327 = vmatpush2.msra.mxu0 %v107
    %328 = vmatprep.subr.mxu0 0.0
    %329 = vmatpush2.msra.mxu0 %v106
    %330 = vmatprep.subr.mxu0 0.0
    %331 = vmatpush2.msra.mxu0 %v105
    %332 = vmatprep.mubr.f32.mxu0 %v241
    %333 = vmatmul.mubr.f32.gmra.mxu0 %v233
    %v334 = vpop.f32.mrf.mxu0
    %v335 = vadd.f32 %v222, %v334
    %v336 = vpop.f32.mrf.mxu0
    %337 = vdwg.mxu0
    %338 = vmatprep.subr.mxu0 0.0
    %339 = vmatpush1.msra.mxu0 %v136
    %340 = vmatprep.subr.mxu0 0.0
    %341 = vmatpush1.msra.mxu0 %v135
    %342 = vmatprep.subr.mxu0 0.0
    %343 = vmatpush1.msra.mxu0 %v134
    %344 = vmatprep.subr.mxu0 0.0
    %345 = vmatpush1.msra.mxu0 %v133
    %346 = vmatprep.subr.mxu0 0.0
    %347 = vmatpush1.msra.mxu0 %v132
    %348 = vmatprep.subr.mxu0 0.0
    %349 = vmatpush1.msra.mxu0 %v131
    %350 = vmatprep.subr.mxu0 0.0
    %351 = vmatpush1.msra.mxu0 %v130
    %352 = vmatprep.subr.mxu0 0.0
    %353 = vmatpush1.msra.mxu0 %v129
    %354 = vmatprep.subr.mxu0 0.0
    %355 = vmatpush1.msra.mxu0 %v128
    %356 = vmatprep.subr.mxu0 0.0
    %357 = vmatpush1.msra.mxu0 %v127
    %358 = vmatprep.subr.mxu0 0.0
    %359 = vmatpush1.msra.mxu0 %v126
    %360 = vmatprep.subr.mxu0 0.0
    %361 = vmatpush1.msra.mxu0 %v125
    %362 = vmatprep.subr.mxu0 0.0
    %363 = vmatpush1.msra.mxu0 %v124
    %364 = vmatprep.subr.mxu0 0.0
    %365 = vmatpush1.msra.mxu0 %v123
    %366 = vmatprep.subr.mxu0 0.0
    %367 = vmatpush1.msra.mxu0 %v122
    %368 = vmatprep.subr.mxu0 0.0
    %369 = vmatpush1.msra.mxu0 %v121
    %370 = vmatprep.subr.mxu0 0.0
    %371 = vmatpush2.msra.mxu0 %v152
    %372 = vmatprep.subr.mxu0 0.0
    %373 = vmatpush2.msra.mxu0 %v151
    %374 = vmatprep.subr.mxu0 0.0
    %375 = vmatpush2.msra.mxu0 %v150
    %376 = vmatprep.subr.mxu0 0.0
    %377 = vmatpush2.msra.mxu0 %v149
    %378 = vmatprep.subr.mxu0 0.0
    %379 = vmatpush2.msra.mxu0 %v148
    %380 = vmatprep.subr.mxu0 0.0
    %381 = vmatpush2.msra.mxu0 %v147
    %382 = vmatprep.subr.mxu0 0.0
    %383 = vmatpush2.msra.mxu0 %v146
    %384 = vmatprep.subr.mxu0 0.0
    %385 = vmatpush2.msra.mxu0 %v145
    %386 = vmatprep.subr.mxu0 0.0
    %387 = vmatpush2.msra.mxu0 %v144
    %388 = vmatprep.subr.mxu0 0.0
    %389 = vmatpush2.msra.mxu0 %v143
    %390 = vmatprep.subr.mxu0 0.0
    %391 = vmatpush2.msra.mxu0 %v142
    %392 = vmatprep.subr.mxu0 0.0
    %393 = vmatpush2.msra.mxu0 %v141
    %394 = vmatprep.subr.mxu0 0.0
    %395 = vmatpush2.msra.mxu0 %v140
    %396 = vmatprep.subr.mxu0 0.0
    %397 = vmatpush2.msra.mxu0 %v139
    %398 = vmatprep.subr.mxu0 0.0
    %399 = vmatpush2.msra.mxu0 %v138
    %400 = vmatprep.subr.mxu0 0.0
    %401 = vmatpush2.msra.mxu0 %v137
    %402 = vmatprep.mubr.f32.mxu0 %v242
    %403 = vmatmul.mubr.f32.gmra.mxu0 %v240
    %v404 = vpop.f32.mrf.mxu0
    %v405 = vadd.f32 %v335, %v404
    %v406 = vpop.f32.mrf.mxu0
    %407 = vdwg.mxu0
    %408 = vmatprep.subr.mxu0 0.0
    %409 = vmatpush1.msra.mxu0 %v168
    %410 = vmatprep.subr.mxu0 0.0
    %411 = vmatpush1.msra.mxu0 %v167
    %412 = vmatprep.subr.mxu0 0.0
    %413 = vmatpush1.msra.mxu0 %v166
    %414 = vmatprep.subr.mxu0 0.0
    %415 = vmatpush1.msra.mxu0 %v165
    %416 = vmatprep.subr.mxu0 0.0
    %417 = vmatpush1.msra.mxu0 %v164
    %418 = vmatprep.subr.mxu0 0.0
    %419 = vmatpush1.msra.mxu0 %v163
    %420 = vmatprep.subr.mxu0 0.0
    %421 = vmatpush1.msra.mxu0 %v162
    %422 = vmatprep.subr.mxu0 0.0
    %423 = vmatpush1.msra.mxu0 %v161
    %424 = vmatprep.subr.mxu0 0.0
    %425 = vmatpush1.msra.mxu0 %v160
    %426 = vmatprep.subr.mxu0 0.0
    %427 = vmatpush1.msra.mxu0 %v159
    %428 = vmatprep.subr.mxu0 0.0
    %429 = vmatpush1.msra.mxu0 %v158
    %430 = vmatprep.subr.mxu0 0.0
    %431 = vmatpush1.msra.mxu0 %v157
    %432 = vmatprep.subr.mxu0 0.0
    %433 = vmatpush1.msra.mxu0 %v156
    %434 = vmatprep.subr.mxu0 0.0
    %435 = vmatpush1.msra.mxu0 %v155
    %436 = vmatprep.subr.mxu0 0.0
    %437 = vmatpush1.msra.mxu0 %v154
    %438 = vmatprep.subr.mxu0 0.0
    %439 = vmatpush1.msra.mxu0 %v153
    %440 = vmatprep.subr.mxu0 0.0
    %441 = vmatpush2.msra.mxu0 %v184
    %442 = vmatprep.subr.mxu0 0.0
    %443 = vmatpush2.msra.mxu0 %v183
    %444 = vmatprep.subr.mxu0 0.0
    %445 = vmatpush2.msra.mxu0 %v182
    %446 = vmatprep.subr.mxu0 0.0
    %447 = vmatpush2.msra.mxu0 %v181
    %448 = vmatprep.subr.mxu0 0.0
    %449 = vmatpush2.msra.mxu0 %v180
    %450 = vmatprep.subr.mxu0 0.0
    %451 = vmatpush2.msra.mxu0 %v179
    %452 = vmatprep.subr.mxu0 0.0
    %453 = vmatpush2.msra.mxu0 %v178
    %454 = vmatprep.subr.mxu0 0.0
    %455 = vmatpush2.msra.mxu0 %v177
    %456 = vmatprep.subr.mxu0 0.0
    %457 = vmatpush2.msra.mxu0 %v176
    %458 = vmatprep.subr.mxu0 0.0
    %459 = vmatpush2.msra.mxu0 %v175
    %460 = vmatprep.subr.mxu0 0.0
    %461 = vmatpush2.msra.mxu0 %v174
    %462 = vmatprep.subr.mxu0 0.0
    %463 = vmatpush2.msra.mxu0 %v173
    %464 = vmatprep.subr.mxu0 0.0
    %465 = vmatpush2.msra.mxu0 %v172
    %466 = vmatprep.subr.mxu0 0.0
    %467 = vmatpush2.msra.mxu0 %v171
    %468 = vmatprep.subr.mxu0 0.0
    %469 = vmatpush2.msra.mxu0 %v170
    %470 = vmatprep.subr.mxu0 0.0
    %471 = vmatpush2.msra.mxu0 %v169
    %472 = vmatprep.mubr.f32.mxu0 %v258
    %473 = vmatmul.mubr.f32.gmra.mxu0 %v250
    %v474 = vpop.f32.mrf.mxu0
    %v475 = vadd.f32 %v405, %v474
    %v476 = vpop.f32.mrf.mxu0
    %477 = vdwg.mxu0
    %478 = vmatprep.subr.mxu0 0.0
    %479 = vmatpush1.msra.mxu0 %v200
    %480 = vmatprep.subr.mxu0 0.0
    %481 = vmatpush1.msra.mxu0 %v199
    %482 = vmatprep.subr.mxu0 0.0
    %483 = vmatpush1.msra.mxu0 %v198
    %484 = vmatprep.subr.mxu0 0.0
    %485 = vmatpush1.msra.mxu0 %v197
    %486 = vmatprep.subr.mxu0 0.0
    %487 = vmatpush1.msra.mxu0 %v196
    %488 = vmatprep.subr.mxu0 0.0
    %489 = vmatpush1.msra.mxu0 %v195
    %490 = vmatprep.subr.mxu0 0.0
    %491 = vmatpush1.msra.mxu0 %v194
    %492 = vmatprep.subr.mxu0 0.0
    %493 = vmatpush1.msra.mxu0 %v193
    %494 = vmatprep.subr.mxu0 0.0
    %495 = vmatpush1.msra.mxu0 %v192
    %496 = vmatprep.subr.mxu0 0.0
    %497 = vmatpush1.msra.mxu0 %v191
    %498 = vmatprep.subr.mxu0 0.0
    %499 = vmatpush1.msra.mxu0 %v190
    %500 = vmatprep.subr.mxu0 0.0
    %501 = vmatpush1.msra.mxu0 %v189
    %502 = vmatprep.subr.mxu0 0.0
    %503 = vmatpush1.msra.mxu0 %v188
    %504 = vmatprep.subr.mxu0 0.0
    %505 = vmatpush1.msra.mxu0 %v187
    %506 = vmatprep.subr.mxu0 0.0
    %507 = vmatpush1.msra.mxu0 %v186
    %508 = vmatprep.subr.mxu0 0.0
    %509 = vmatpush1.msra.mxu0 %v185
    %510 = vmatprep.subr.mxu0 0.0
    %511 = vmatpush2.msra.mxu0 %v216
    %512 = vmatprep.subr.mxu0 0.0
    %513 = vmatpush2.msra.mxu0 %v215
    %514 = vmatprep.subr.mxu0 0.0
    %515 = vmatpush2.msra.mxu0 %v214
    %516 = vmatprep.subr.mxu0 0.0
    %517 = vmatpush2.msra.mxu0 %v213
    %518 = vmatprep.subr.mxu0 0.0
    %519 = vmatpush2.msra.mxu0 %v212
    %520 = vmatprep.subr.mxu0 0.0
    %521 = vmatpush2.msra.mxu0 %v211
    %522 = vmatprep.subr.mxu0 0.0
    %523 = vmatpush2.msra.mxu0 %v210
    %524 = vmatprep.subr.mxu0 0.0
    %525 = vmatpush2.msra.mxu0 %v209
    %526 = vmatprep.subr.mxu0 0.0
    %527 = vmatpush2.msra.mxu0 %v208
    %528 = vmatprep.subr.mxu0 0.0
    %529 = vmatpush2.msra.mxu0 %v207
    %530 = vmatprep.subr.mxu0 0.0
    %531 = vmatpush2.msra.mxu0 %v206
    %532 = vmatprep.subr.mxu0 0.0
    %533 = vmatpush2.msra.mxu0 %v205
    %534 = vmatprep.subr.mxu0 0.0
    %535 = vmatpush2.msra.mxu0 %v204
    %536 = vmatprep.subr.mxu0 0.0
    %537 = vmatpush2.msra.mxu0 %v203
    %538 = vmatprep.subr.mxu0 0.0
    %539 = vmatpush2.msra.mxu0 %v202
    %540 = vmatprep.subr.mxu0 0.0
    %541 = vmatpush2.msra.mxu0 %v201
    %542 = vmatprep.mubr.f32.mxu0 %v259
    %543 = vmatmul.mubr.f32.gmra.mxu0 %v257
    %v544 = vpop.f32.mrf.mxu0
    %v545 = vadd.f32 %v475, %v544
    %v546 = vpop.f32.mrf.mxu0
    %547 = vdwg.mxu0
    %v548 = vld [vmem:[#allocation7] sm:$0xff]
    %v549 = vld [vmem:[#allocation7 + $0x8] sm:$0xff]
    %v550 = vld [vmem:[#allocation7 + $0x10] sm:$0xff]
    %v551 = vld [vmem:[#allocation7 + $0x18] sm:$0xff]
    %v552 = vld [vmem:[#allocation7 + $0x20] sm:$0xff]
    %v553 = vld [vmem:[#allocation7 + $0x28] sm:$0xff]
    %v554 = vld [vmem:[#allocation7 + $0x30] sm:$0xff]
    %v555 = vld [vmem:[#allocation7 + $0x38] sm:$0xff]
    %v556 = vld [vmem:[#allocation7 + $0x40] sm:$0xff]
    %v557 = vld [vmem:[#allocation7 + $0x48] sm:$0xff]
    %v558 = vld [vmem:[#allocation7 + $0x50] sm:$0xff]
    %v559 = vld [vmem:[#allocation7 + $0x58] sm:$0xff]
    %v560 = vld [vmem:[#allocation7 + $0x60] sm:$0xff]
    %v561 = vld [vmem:[#allocation7 + $0x68] sm:$0xff]
    %v562 = vld [vmem:[#allocation7 + $0x70] sm:$0xff]
    %v563 = vld [vmem:[#allocation7 + $0x78] sm:$0xff]
    %v564 = vld [vmem:[#allocation7 + $0x80] sm:$0xff]
    %v565 = vld [vmem:[#allocation7 + $0x88] sm:$0xff]
    %v566 = vld [vmem:[#allocation7 + $0x90] sm:$0xff]
    %v567 = vld [vmem:[#allocation7 + $0x98] sm:$0xff]
    %v568 = vld [vmem:[#allocation7 + $0xa0] sm:$0xff]
    %v569 = vld [vmem:[#allocation7 + $0xa8] sm:$0xff]
    %v570 = vld [vmem:[#allocation7 + $0xb0] sm:$0xff]
    %v571 = vld [vmem:[#allocation7 + $0xb8] sm:$0xff]
    %v572 = vld [vmem:[#allocation7 + $0xc0] sm:$0xff]
    %v573 = vld [vmem:[#allocation7 + $0xc8] sm:$0xff]
    %v574 = vld [vmem:[#allocation7 + $0xd0] sm:$0xff]
    %v575 = vld [vmem:[#allocation7 + $0xd8] sm:$0xff]
    %v576 = vld [vmem:[#allocation7 + $0xe0] sm:$0xff]
    %v577 = vld [vmem:[#allocation7 + $0xe8] sm:$0xff]
    %v578 = vld [vmem:[#allocation7 + $0xf0] sm:$0xff]
    %v579 = vld [vmem:[#allocation7 + $0xf8] sm:$0xff]
    %v580 = vld [vmem:[#allocation7 + $0x100] sm:$0xff]
    %v581 = vld [vmem:[#allocation7 + $0x108] sm:$0xff]
    %v582 = vld [vmem:[#allocation7 + $0x110] sm:$0xff]
    %v583 = vld [vmem:[#allocation7 + $0x118] sm:$0xff]
    %v584 = vld [vmem:[#allocation7 + $0x120] sm:$0xff]
    %v585 = vld [vmem:[#allocation7 + $0x128] sm:$0xff]
    %v586 = vld [vmem:[#allocation7 + $0x130] sm:$0xff]
    %v587 = vld [vmem:[#allocation7 + $0x138] sm:$0xff]
    %v588 = vld [vmem:[#allocation7 + $0x140] sm:$0xff]
    %v589 = vld [vmem:[#allocation7 + $0x148] sm:$0xff]
    %v590 = vld [vmem:[#allocation7 + $0x150] sm:$0xff]
    %v591 = vld [vmem:[#allocation7 + $0x158] sm:$0xff]
    %v592 = vld [vmem:[#allocation7 + $0x160] sm:$0xff]
    %v593 = vld [vmem:[#allocation7 + $0x168] sm:$0xff]
    %v594 = vld [vmem:[#allocation7 + $0x170] sm:$0xff]
    %v595 = vld [vmem:[#allocation7 + $0x178] sm:$0xff]
    %v596 = vld [vmem:[#allocation7 + $0x180] sm:$0xff]
    %v597 = vld [vmem:[#allocation7 + $0x188] sm:$0xff]
    %v598 = vld [vmem:[#allocation7 + $0x190] sm:$0xff]
    %v599 = vld [vmem:[#allocation7 + $0x198] sm:$0xff]
    %v600 = vld [vmem:[#allocation7 + $0x1a0] sm:$0xff]
    %v601 = vld [vmem:[#allocation7 + $0x1a8] sm:$0xff]
    %v602 = vld [vmem:[#allocation7 + $0x1b0] sm:$0xff]
    %v603 = vld [vmem:[#allocation7 + $0x1b8] sm:$0xff]
    %v604 = vld [vmem:[#allocation7 + $0x1c0] sm:$0xff]
    %v605 = vld [vmem:[#allocation7 + $0x1c8] sm:$0xff]
    %v606 = vld [vmem:[#allocation7 + $0x1d0] sm:$0xff]
    %v607 = vld [vmem:[#allocation7 + $0x1d8] sm:$0xff]
    %v608 = vld [vmem:[#allocation7 + $0x1e0] sm:$0xff]
    %v609 = vld [vmem:[#allocation7 + $0x1e8] sm:$0xff]
    %v610 = vld [vmem:[#allocation7 + $0x1f0] sm:$0xff]
    %v611 = vld [vmem:[#allocation7 + $0x1f8] sm:$0xff]
    %v612 = vld [vmem:[#allocation7 + $0x200] sm:$0xff]
    %v613 = vld [vmem:[#allocation7 + $0x208] sm:$0xff]
    %v614 = vld [vmem:[#allocation7 + $0x210] sm:$0xff]
    %v615 = vld [vmem:[#allocation7 + $0x218] sm:$0xff]
    %v616 = vld [vmem:[#allocation7 + $0x220] sm:$0xff]
    %v617 = vld [vmem:[#allocation7 + $0x228] sm:$0xff]
    %v618 = vld [vmem:[#allocation7 + $0x230] sm:$0xff]
    %v619 = vld [vmem:[#allocation7 + $0x238] sm:$0xff]
    %v620 = vld [vmem:[#allocation7 + $0x240] sm:$0xff]
    %v621 = vld [vmem:[#allocation7 + $0x248] sm:$0xff]
    %v622 = vld [vmem:[#allocation7 + $0x250] sm:$0xff]
    %v623 = vld [vmem:[#allocation7 + $0x258] sm:$0xff]
    %v624 = vld [vmem:[#allocation7 + $0x260] sm:$0xff]
    %v625 = vld [vmem:[#allocation7 + $0x268] sm:$0xff]
    %v626 = vld [vmem:[#allocation7 + $0x270] sm:$0xff]
    %v627 = vld [vmem:[#allocation7 + $0x278] sm:$0xff]
    %v628 = vld [vmem:[#allocation7 + $0x280] sm:$0xff]
    %v629 = vld [vmem:[#allocation7 + $0x288] sm:$0xff]
    %v630 = vld [vmem:[#allocation7 + $0x290] sm:$0xff]
    %v631 = vld [vmem:[#allocation7 + $0x298] sm:$0xff]
    %v632 = vld [vmem:[#allocation7 + $0x2a0] sm:$0xff]
    %v633 = vld [vmem:[#allocation7 + $0x2a8] sm:$0xff]
    %v634 = vld [vmem:[#allocation7 + $0x2b0] sm:$0xff]
    %v635 = vld [vmem:[#allocation7 + $0x2b8] sm:$0xff]
    %v636 = vld [vmem:[#allocation7 + $0x2c0] sm:$0xff]
    %v637 = vld [vmem:[#allocation7 + $0x2c8] sm:$0xff]
    %v638 = vld [vmem:[#allocation7 + $0x2d0] sm:$0xff]
    %v639 = vld [vmem:[#allocation7 + $0x2d8] sm:$0xff]
    %v640 = vld [vmem:[#allocation7 + $0x2e0] sm:$0xff]
    %v641 = vld [vmem:[#allocation7 + $0x2e8] sm:$0xff]
    %v642 = vld [vmem:[#allocation7 + $0x2f0] sm:$0xff]
    %v643 = vld [vmem:[#allocation7 + $0x2f8] sm:$0xff]
    %v644 = vld [vmem:[#allocation7 + $0x300] sm:$0xff]
    %v645 = vld [vmem:[#allocation7 + $0x308] sm:$0xff]
    %v646 = vld [vmem:[#allocation7 + $0x310] sm:$0xff]
    %v647 = vld [vmem:[#allocation7 + $0x318] sm:$0xff]
    %v648 = vld [vmem:[#allocation7 + $0x320] sm:$0xff]
    %v649 = vld [vmem:[#allocation7 + $0x328] sm:$0xff]
    %v650 = vld [vmem:[#allocation7 + $0x330] sm:$0xff]
    %v651 = vld [vmem:[#allocation7 + $0x338] sm:$0xff]
    %v652 = vld [vmem:[#allocation7 + $0x340] sm:$0xff]
    %v653 = vld [vmem:[#allocation7 + $0x348] sm:$0xff]
    %v654 = vld [vmem:[#allocation7 + $0x350] sm:$0xff]
    %v655 = vld [vmem:[#allocation7 + $0x358] sm:$0xff]
    %v656 = vld [vmem:[#allocation7 + $0x360] sm:$0xff]
    %v657 = vld [vmem:[#allocation7 + $0x368] sm:$0xff]
    %v658 = vld [vmem:[#allocation7 + $0x370] sm:$0xff]
    %v659 = vld [vmem:[#allocation7 + $0x378] sm:$0xff]
    %v660 = vld [vmem:[#allocation7 + $0x380] sm:$0xff]
    %v661 = vld [vmem:[#allocation7 + $0x388] sm:$0xff]
    %v662 = vld [vmem:[#allocation7 + $0x390] sm:$0xff]
    %v663 = vld [vmem:[#allocation7 + $0x398] sm:$0xff]
    %v664 = vld [vmem:[#allocation7 + $0x3a0] sm:$0xff]
    %v665 = vld [vmem:[#allocation7 + $0x3a8] sm:$0xff]
    %v666 = vld [vmem:[#allocation7 + $0x3b0] sm:$0xff]
    %v667 = vld [vmem:[#allocation7 + $0x3b8] sm:$0xff]
    %v668 = vld [vmem:[#allocation7 + $0x3c0] sm:$0xff]
    %v669 = vld [vmem:[#allocation7 + $0x3c8] sm:$0xff]
    %v670 = vld [vmem:[#allocation7 + $0x3d0] sm:$0xff]
    %v671 = vld [vmem:[#allocation7 + $0x3d8] sm:$0xff]
    %v672 = vld [vmem:[#allocation7 + $0x3e0] sm:$0xff]
    %v673 = vld [vmem:[#allocation7 + $0x3e8] sm:$0xff]
    %v674 = vld [vmem:[#allocation7 + $0x3f0] sm:$0xff]
    %v675 = vld [vmem:[#allocation7 + $0x3f8] sm:$0xff]
    %v676 = vld [vmem:[%s4] sm:$0x1]
    %v678 = vlaneseq
    %v679 = vshrl.u32 %v678, 7
    %v680 = vsub.s32 0, %v679
    %v681 = vrot.slane %v676, %v680
    %683 = vmatprep.subr.mxu0 0.0
    %684 = vmatpush1.msra.mxu0 %v563
    %685 = vmatprep.subr.mxu0 0.0
    %686 = vmatpush1.msra.mxu0 %v562
    %687 = vmatprep.subr.mxu0 0.0
    %688 = vmatpush1.msra.mxu0 %v561
    %689 = vmatprep.subr.mxu0 0.0
    %690 = vmatpush1.msra.mxu0 %v560
    %691 = vmatprep.subr.mxu0 0.0
    %692 = vmatpush1.msra.mxu0 %v559
    %693 = vmatprep.subr.mxu0 0.0
    %694 = vmatpush1.msra.mxu0 %v558
    %695 = vmatprep.subr.mxu0 0.0
    %696 = vmatpush1.msra.mxu0 %v557
    %697 = vmatprep.subr.mxu0 0.0
    %698 = vmatpush1.msra.mxu0 %v556
    %699 = vmatprep.subr.mxu0 0.0
    %700 = vmatpush1.msra.mxu0 %v555
    %701 = vmatprep.subr.mxu0 0.0
    %702 = vmatpush1.msra.mxu0 %v554
    %703 = vmatprep.subr.mxu0 0.0
    %704 = vmatpush1.msra.mxu0 %v553
    %705 = vmatprep.subr.mxu0 0.0
    %706 = vmatpush1.msra.mxu0 %v552
    %707 = vmatprep.subr.mxu0 0.0
    %708 = vmatpush1.msra.mxu0 %v551
    %709 = vmatprep.subr.mxu0 0.0
    %710 = vmatpush1.msra.mxu0 %v550
    %711 = vmatprep.subr.mxu0 0.0
    %712 = vmatpush1.msra.mxu0 %v549
    %713 = vmatprep.subr.mxu0 0.0
    %714 = vmatpush1.msra.mxu0 %v548
    %715 = vmatprep.subr.mxu0 0.0
    %716 = vmatpush2.msra.mxu0 %v579
    %717 = vmatprep.subr.mxu0 0.0
    %718 = vmatpush2.msra.mxu0 %v578
    %719 = vmatprep.subr.mxu0 0.0
    %720 = vmatpush2.msra.mxu0 %v577
    %721 = vmatprep.subr.mxu0 0.0
    %722 = vmatpush2.msra.mxu0 %v576
    %723 = vmatprep.subr.mxu0 0.0
    %724 = vmatpush2.msra.mxu0 %v575
    %725 = vmatprep.subr.mxu0 0.0
    %726 = vmatpush2.msra.mxu0 %v574
    %727 = vmatprep.subr.mxu0 0.0
    %728 = vmatpush2.msra.mxu0 %v573
    %729 = vmatprep.subr.mxu0 0.0
    %730 = vmatpush2.msra.mxu0 %v572
    %731 = vmatprep.subr.mxu0 0.0
    %732 = vmatpush2.msra.mxu0 %v571
    %733 = vmatprep.subr.mxu0 0.0
    %734 = vmatpush2.msra.mxu0 %v570
    %735 = vmatprep.subr.mxu0 0.0
    %736 = vmatpush2.msra.mxu0 %v569
    %737 = vmatprep.subr.mxu0 0.0
    %738 = vmatpush2.msra.mxu0 %v568
    %739 = vmatprep.subr.mxu0 0.0
    %740 = vmatpush2.msra.mxu0 %v567
    %741 = vmatprep.subr.mxu0 0.0
    %742 = vmatpush2.msra.mxu0 %v566
    %743 = vmatprep.subr.mxu0 0.0
    %744 = vmatpush2.msra.mxu0 %v565
    %745 = vmatprep.subr.mxu0 0.0
    %746 = vmatpush2.msra.mxu0 %v564
    %747 = vmatprep.mubr.f32.mxu0 %v241
    %748 = vmatmul.mubr.f32.gmra.mxu0 %v233
    %v749 = vpop.f32.mrf.mxu0
    %v750 = vadd.f32 %v681, %v749
    %v751 = vpop.f32.mrf.mxu0
    %752 = vdwg.mxu0
    %753 = vmatprep.subr.mxu0 0.0
    %754 = vmatpush1.msra.mxu0 %v595
    %755 = vmatprep.subr.mxu0 0.0
    %756 = vmatpush1.msra.mxu0 %v594
    %757 = vmatprep.subr.mxu0 0.0
    %758 = vmatpush1.msra.mxu0 %v593
    %759 = vmatprep.subr.mxu0 0.0
    %760 = vmatpush1.msra.mxu0 %v592
    %761 = vmatprep.subr.mxu0 0.0
    %762 = vmatpush1.msra.mxu0 %v591
    %763 = vmatprep.subr.mxu0 0.0
    %764 = vmatpush1.msra.mxu0 %v590
    %765 = vmatprep.subr.mxu0 0.0
    %766 = vmatpush1.msra.mxu0 %v589
    %767 = vmatprep.subr.mxu0 0.0
    %768 = vmatpush1.msra.mxu0 %v588
    %769 = vmatprep.subr.mxu0 0.0
    %770 = vmatpush1.msra.mxu0 %v587
    %771 = vmatprep.subr.mxu0 0.0
    %772 = vmatpush1.msra.mxu0 %v586
    %773 = vmatprep.subr.mxu0 0.0
    %774 = vmatpush1.msra.mxu0 %v585
    %775 = vmatprep.subr.mxu0 0.0
    %776 = vmatpush1.msra.mxu0 %v584
    %777 = vmatprep.subr.mxu0 0.0
    %778 = vmatpush1.msra.mxu0 %v583
    %779 = vmatprep.subr.mxu0 0.0
    %780 = vmatpush1.msra.mxu0 %v582
    %781 = vmatprep.subr.mxu0 0.0
    %782 = vmatpush1.msra.mxu0 %v581
    %783 = vmatprep.subr.mxu0 0.0
    %784 = vmatpush1.msra.mxu0 %v580
    %785 = vmatprep.subr.mxu0 0.0
    %786 = vmatpush2.msra.mxu0 %v611
    %787 = vmatprep.subr.mxu0 0.0
    %788 = vmatpush2.msra.mxu0 %v610
    %789 = vmatprep.subr.mxu0 0.0
    %790 = vmatpush2.msra.mxu0 %v609
    %791 = vmatprep.subr.mxu0 0.0
    %792 = vmatpush2.msra.mxu0 %v608
    %793 = vmatprep.subr.mxu0 0.0
    %794 = vmatpush2.msra.mxu0 %v607
    %795 = vmatprep.subr.mxu0 0.0
    %796 = vmatpush2.msra.mxu0 %v606
    %797 = vmatprep.subr.mxu0 0.0
    %798 = vmatpush2.msra.mxu0 %v605
    %799 = vmatprep.subr.mxu0 0.0
    %800 = vmatpush2.msra.mxu0 %v604
    %801 = vmatprep.subr.mxu0 0.0
    %802 = vmatpush2.msra.mxu0 %v603
    %803 = vmatprep.subr.mxu0 0.0
    %804 = vmatpush2.msra.mxu0 %v602
    %805 = vmatprep.subr.mxu0 0.0
    %806 = vmatpush2.msra.mxu0 %v601
    %807 = vmatprep.subr.mxu0 0.0
    %808 = vmatpush2.msra.mxu0 %v600
    %809 = vmatprep.subr.mxu0 0.0
    %810 = vmatpush2.msra.mxu0 %v599
    %811 = vmatprep.subr.mxu0 0.0
    %812 = vmatpush2.msra.mxu0 %v598
    %813 = vmatprep.subr.mxu0 0.0
    %814 = vmatpush2.msra.mxu0 %v597
    %815 = vmatprep.subr.mxu0 0.0
    %816 = vmatpush2.msra.mxu0 %v596
    %817 = vmatprep.mubr.f32.mxu0 %v242
    %818 = vmatmul.mubr.f32.gmra.mxu0 %v240
    %v819 = vpop.f32.mrf.mxu0
    %v820 = vadd.f32 %v750, %v819
    %v821 = vpop.f32.mrf.mxu0
    %822 = vdwg.mxu0
    %823 = vmatprep.subr.mxu0 0.0
    %824 = vmatpush1.msra.mxu0 %v627
    %825 = vmatprep.subr.mxu0 0.0
    %826 = vmatpush1.msra.mxu0 %v626
    %827 = vmatprep.subr.mxu0 0.0
    %828 = vmatpush1.msra.mxu0 %v625
    %829 = vmatprep.subr.mxu0 0.0
    %830 = vmatpush1.msra.mxu0 %v624
    %831 = vmatprep.subr.mxu0 0.0
    %832 = vmatpush1.msra.mxu0 %v623
    %833 = vmatprep.subr.mxu0 0.0
    %834 = vmatpush1.msra.mxu0 %v622
    %835 = vmatprep.subr.mxu0 0.0
    %836 = vmatpush1.msra.mxu0 %v621
    %837 = vmatprep.subr.mxu0 0.0
    %838 = vmatpush1.msra.mxu0 %v620
    %839 = vmatprep.subr.mxu0 0.0
    %840 = vmatpush1.msra.mxu0 %v619
    %841 = vmatprep.subr.mxu0 0.0
    %842 = vmatpush1.msra.mxu0 %v618
    %843 = vmatprep.subr.mxu0 0.0
    %844 = vmatpush1.msra.mxu0 %v617
    %845 = vmatprep.subr.mxu0 0.0
    %846 = vmatpush1.msra.mxu0 %v616
    %847 = vmatprep.subr.mxu0 0.0
    %848 = vmatpush1.msra.mxu0 %v615
    %849 = vmatprep.subr.mxu0 0.0
    %850 = vmatpush1.msra.mxu0 %v614
    %851 = vmatprep.subr.mxu0 0.0
    %852 = vmatpush1.msra.mxu0 %v613
    %853 = vmatprep.subr.mxu0 0.0
    %854 = vmatpush1.msra.mxu0 %v612
    %855 = vmatprep.subr.mxu0 0.0
    %856 = vmatpush2.msra.mxu0 %v643
    %857 = vmatprep.subr.mxu0 0.0
    %858 = vmatpush2.msra.mxu0 %v642
    %859 = vmatprep.subr.mxu0 0.0
    %860 = vmatpush2.msra.mxu0 %v641
    %861 = vmatprep.subr.mxu0 0.0
    %862 = vmatpush2.msra.mxu0 %v640
    %863 = vmatprep.subr.mxu0 0.0
    %864 = vmatpush2.msra.mxu0 %v639
    %865 = vmatprep.subr.mxu0 0.0
    %866 = vmatpush2.msra.mxu0 %v638
    %867 = vmatprep.subr.mxu0 0.0
    %868 = vmatpush2.msra.mxu0 %v637
    %869 = vmatprep.subr.mxu0 0.0
    %870 = vmatpush2.msra.mxu0 %v636
    %871 = vmatprep.subr.mxu0 0.0
    %872 = vmatpush2.msra.mxu0 %v635
    %873 = vmatprep.subr.mxu0 0.0
    %874 = vmatpush2.msra.mxu0 %v634
    %875 = vmatprep.subr.mxu0 0.0
    %876 = vmatpush2.msra.mxu0 %v633
    %877 = vmatprep.subr.mxu0 0.0
    %878 = vmatpush2.msra.mxu0 %v632
    %879 = vmatprep.subr.mxu0 0.0
    %880 = vmatpush2.msra.mxu0 %v631
    %881 = vmatprep.subr.mxu0 0.0
    %882 = vmatpush2.msra.mxu0 %v630
    %883 = vmatprep.subr.mxu0 0.0
    %884 = vmatpush2.msra.mxu0 %v629
    %885 = vmatprep.subr.mxu0 0.0
    %886 = vmatpush2.msra.mxu0 %v628
    %887 = vmatprep.mubr.f32.mxu0 %v258
    %888 = vmatmul.mubr.f32.gmra.mxu0 %v250
    %v889 = vpop.f32.mrf.mxu0
    %v890 = vadd.f32 %v820, %v889
    %v891 = vpop.f32.mrf.mxu0
    %892 = vdwg.mxu0
    %893 = vmatprep.subr.mxu0 0.0
    %894 = vmatpush1.msra.mxu0 %v659
    %895 = vmatprep.subr.mxu0 0.0
    %896 = vmatpush1.msra.mxu0 %v658
    %897 = vmatprep.subr.mxu0 0.0
    %898 = vmatpush1.msra.mxu0 %v657
    %899 = vmatprep.subr.mxu0 0.0
    %900 = vmatpush1.msra.mxu0 %v656
    %901 = vmatprep.subr.mxu0 0.0
    %902 = vmatpush1.msra.mxu0 %v655
    %903 = vmatprep.subr.mxu0 0.0
    %904 = vmatpush1.msra.mxu0 %v654
    %905 = vmatprep.subr.mxu0 0.0
    %906 = vmatpush1.msra.mxu0 %v653
    %907 = vmatprep.subr.mxu0 0.0
    %908 = vmatpush1.msra.mxu0 %v652
    %909 = vmatprep.subr.mxu0 0.0
    %910 = vmatpush1.msra.mxu0 %v651
    %911 = vmatprep.subr.mxu0 0.0
    %912 = vmatpush1.msra.mxu0 %v650
    %913 = vmatprep.subr.mxu0 0.0
    %914 = vmatpush1.msra.mxu0 %v649
    %915 = vmatprep.subr.mxu0 0.0
    %916 = vmatpush1.msra.mxu0 %v648
    %917 = vmatprep.subr.mxu0 0.0
    %918 = vmatpush1.msra.mxu0 %v647
    %919 = vmatprep.subr.mxu0 0.0
    %920 = vmatpush1.msra.mxu0 %v646
    %921 = vmatprep.subr.mxu0 0.0
    %922 = vmatpush1.msra.mxu0 %v645
    %923 = vmatprep.subr.mxu0 0.0
    %924 = vmatpush1.msra.mxu0 %v644
    %925 = vmatprep.subr.mxu0 0.0
    %926 = vmatpush2.msra.mxu0 %v675
    %927 = vmatprep.subr.mxu0 0.0
    %928 = vmatpush2.msra.mxu0 %v674
    %929 = vmatprep.subr.mxu0 0.0
    %930 = vmatpush2.msra.mxu0 %v673
    %931 = vmatprep.subr.mxu0 0.0
    %932 = vmatpush2.msra.mxu0 %v672
    %933 = vmatprep.subr.mxu0 0.0
    %934 = vmatpush2.msra.mxu0 %v671
    %935 = vmatprep.subr.mxu0 0.0
    %936 = vmatpush2.msra.mxu0 %v670
    %937 = vmatprep.subr.mxu0 0.0
    %938 = vmatpush2.msra.mxu0 %v669
    %939 = vmatprep.subr.mxu0 0.0
    %940 = vmatpush2.msra.mxu0 %v668
    %941 = vmatprep.subr.mxu0 0.0
    %942 = vmatpush2.msra.mxu0 %v667
    %943 = vmatprep.subr.mxu0 0.0
    %944 = vmatpush2.msra.mxu0 %v666
    %945 = vmatprep.subr.mxu0 0.0
    %946 = vmatpush2.msra.mxu0 %v665
    %947 = vmatprep.subr.mxu0 0.0
    %948 = vmatpush2.msra.mxu0 %v664
    %949 = vmatprep.subr.mxu0 0.0
    %950 = vmatpush2.msra.mxu0 %v663
    %951 = vmatprep.subr.mxu0 0.0
    %952 = vmatpush2.msra.mxu0 %v662
    %953 = vmatprep.subr.mxu0 0.0
    %954 = vmatpush2.msra.mxu0 %v661
    %955 = vmatprep.subr.mxu0 0.0
    %956 = vmatpush2.msra.mxu0 %v660
    %957 = vmatprep.mubr.f32.mxu0 %v259
    %958 = vmatmul.mubr.f32.gmra.mxu0 %v257
    %v959 = vpop.f32.mrf.mxu0
    %v960 = vadd.f32 %v890, %v959
    %v961 = vpop.f32.mrf.mxu0
    %962 = vdwg.mxu0
    %v963 = vmax.f32 %v960, -30.0
    %v964 = vmin.f32 %v963, 30.0
    %v965 = vmul.f32 %v964, 0.5
    %v966 = vmul.f32 %v965, 1.442695
    %v967 = vpow.pop %v966
    %v968 = vld [vmem:[%s5] sm:$0x3]
    %v969 = vmul.f32 %v967, %v968
    %v970 = vadd.f32 %v545, %v969
    %v971 = vld [vmem:[#allocation8] sm:$0xff]
    %v972 = vld [vmem:[#allocation8 + $0x8] sm:$0xff]
    %v973 = vld [vmem:[#allocation8 + $0x10] sm:$0xff]
    %v974 = vld [vmem:[#allocation8 + $0x18] sm:$0xff]
    %v975 = vld [vmem:[#allocation8 + $0x20] sm:$0xff]
    %v976 = vld [vmem:[#allocation8 + $0x28] sm:$0xff]
    %v977 = vld [vmem:[#allocation8 + $0x30] sm:$0xff]
    %v978 = vld [vmem:[#allocation8 + $0x38] sm:$0xff]
    %v979 = vld [vmem:[#allocation8 + $0x40] sm:$0xff]
    %v980 = vld [vmem:[#allocation8 + $0x48] sm:$0xff]
    %v981 = vld [vmem:[#allocation8 + $0x50] sm:$0xff]
    %v982 = vld [vmem:[#allocation8 + $0x58] sm:$0xff]
    %v983 = vld [vmem:[#allocation8 + $0x60] sm:$0xff]
    %v984 = vld [vmem:[#allocation8 + $0x68] sm:$0xff]
    %v985 = vld [vmem:[#allocation8 + $0x70] sm:$0xff]
    %v986 = vld [vmem:[#allocation8 + $0x78] sm:$0xff]
    %v987 = vld [vmem:[#allocation8 + $0x80] sm:$0xff]
    %v988 = vld [vmem:[#allocation8 + $0x88] sm:$0xff]
    %v989 = vld [vmem:[#allocation8 + $0x90] sm:$0xff]
    %v990 = vld [vmem:[#allocation8 + $0x98] sm:$0xff]
    %v991 = vld [vmem:[#allocation8 + $0xa0] sm:$0xff]
    %v992 = vld [vmem:[#allocation8 + $0xa8] sm:$0xff]
    %v993 = vld [vmem:[#allocation8 + $0xb0] sm:$0xff]
    %v994 = vld [vmem:[#allocation8 + $0xb8] sm:$0xff]
    %v995 = vld [vmem:[#allocation8 + $0xc0] sm:$0xff]
    %v996 = vld [vmem:[#allocation8 + $0xc8] sm:$0xff]
    %v997 = vld [vmem:[#allocation8 + $0xd0] sm:$0xff]
    %v998 = vld [vmem:[#allocation8 + $0xd8] sm:$0xff]
    %v999 = vld [vmem:[#allocation8 + $0xe0] sm:$0xff]
    %v1000 = vld [vmem:[#allocation8 + $0xe8] sm:$0xff]
    %v1001 = vld [vmem:[#allocation8 + $0xf0] sm:$0xff]
    %v1002 = vld [vmem:[#allocation8 + $0xf8] sm:$0xff]
    %v1003 = vld [vmem:[#allocation8 + $0x100] sm:$0xff]
    %v1004 = vld [vmem:[#allocation8 + $0x108] sm:$0xff]
    %v1005 = vld [vmem:[#allocation8 + $0x110] sm:$0xff]
    %v1006 = vld [vmem:[#allocation8 + $0x118] sm:$0xff]
    %v1007 = vld [vmem:[#allocation8 + $0x120] sm:$0xff]
    %v1008 = vld [vmem:[#allocation8 + $0x128] sm:$0xff]
    %v1009 = vld [vmem:[#allocation8 + $0x130] sm:$0xff]
    %v1010 = vld [vmem:[#allocation8 + $0x138] sm:$0xff]
    %v1011 = vld [vmem:[#allocation8 + $0x140] sm:$0xff]
    %v1012 = vld [vmem:[#allocation8 + $0x148] sm:$0xff]
    %v1013 = vld [vmem:[#allocation8 + $0x150] sm:$0xff]
    %v1014 = vld [vmem:[#allocation8 + $0x158] sm:$0xff]
    %v1015 = vld [vmem:[#allocation8 + $0x160] sm:$0xff]
    %v1016 = vld [vmem:[#allocation8 + $0x168] sm:$0xff]
    %v1017 = vld [vmem:[#allocation8 + $0x170] sm:$0xff]
    %v1018 = vld [vmem:[#allocation8 + $0x178] sm:$0xff]
    %v1019 = vld [vmem:[#allocation8 + $0x180] sm:$0xff]
    %v1020 = vld [vmem:[#allocation8 + $0x188] sm:$0xff]
    %v1021 = vld [vmem:[#allocation8 + $0x190] sm:$0xff]
    %v1022 = vld [vmem:[#allocation8 + $0x198] sm:$0xff]
    %v1023 = vld [vmem:[#allocation8 + $0x1a0] sm:$0xff]
    %v1024 = vld [vmem:[#allocation8 + $0x1a8] sm:$0xff]
    %v1025 = vld [vmem:[#allocation8 + $0x1b0] sm:$0xff]
    %v1026 = vld [vmem:[#allocation8 + $0x1b8] sm:$0xff]
    %v1027 = vld [vmem:[#allocation8 + $0x1c0] sm:$0xff]
    %v1028 = vld [vmem:[#allocation8 + $0x1c8] sm:$0xff]
    %v1029 = vld [vmem:[#allocation8 + $0x1d0] sm:$0xff]
    %v1030 = vld [vmem:[#allocation8 + $0x1d8] sm:$0xff]
    %v1031 = vld [vmem:[#allocation8 + $0x1e0] sm:$0xff]
    %v1032 = vld [vmem:[#allocation8 + $0x1e8] sm:$0xff]
    %v1033 = vld [vmem:[#allocation8 + $0x1f0] sm:$0xff]
    %v1034 = vld [vmem:[#allocation8 + $0x1f8] sm:$0xff]
    %v1035 = vld [vmem:[#allocation8 + $0x200] sm:$0xff]
    %v1036 = vld [vmem:[#allocation8 + $0x208] sm:$0xff]
    %v1037 = vld [vmem:[#allocation8 + $0x210] sm:$0xff]
    %v1038 = vld [vmem:[#allocation8 + $0x218] sm:$0xff]
    %v1039 = vld [vmem:[#allocation8 + $0x220] sm:$0xff]
    %v1040 = vld [vmem:[#allocation8 + $0x228] sm:$0xff]
    %v1041 = vld [vmem:[#allocation8 + $0x230] sm:$0xff]
    %v1042 = vld [vmem:[#allocation8 + $0x238] sm:$0xff]
    %v1043 = vld [vmem:[#allocation8 + $0x240] sm:$0xff]
    %v1044 = vld [vmem:[#allocation8 + $0x248] sm:$0xff]
    %v1045 = vld [vmem:[#allocation8 + $0x250] sm:$0xff]
    %v1046 = vld [vmem:[#allocation8 + $0x258] sm:$0xff]
    %v1047 = vld [vmem:[#allocation8 + $0x260] sm:$0xff]
    %v1048 = vld [vmem:[#allocation8 + $0x268] sm:$0xff]
    %v1049 = vld [vmem:[#allocation8 + $0x270] sm:$0xff]
    %v1050 = vld [vmem:[#allocation8 + $0x278] sm:$0xff]
    %v1051 = vld [vmem:[#allocation8 + $0x280] sm:$0xff]
    %v1052 = vld [vmem:[#allocation8 + $0x288] sm:$0xff]
    %v1053 = vld [vmem:[#allocation8 + $0x290] sm:$0xff]
    %v1054 = vld [vmem:[#allocation8 + $0x298] sm:$0xff]
    %v1055 = vld [vmem:[#allocation8 + $0x2a0] sm:$0xff]
    %v1056 = vld [vmem:[#allocation8 + $0x2a8] sm:$0xff]
    %v1057 = vld [vmem:[#allocation8 + $0x2b0] sm:$0xff]
    %v1058 = vld [vmem:[#allocation8 + $0x2b8] sm:$0xff]
    %v1059 = vld [vmem:[#allocation8 + $0x2c0] sm:$0xff]
    %v1060 = vld [vmem:[#allocation8 + $0x2c8] sm:$0xff]
    %v1061 = vld [vmem:[#allocation8 + $0x2d0] sm:$0xff]
    %v1062 = vld [vmem:[#allocation8 + $0x2d8] sm:$0xff]
    %v1063 = vld [vmem:[#allocation8 + $0x2e0] sm:$0xff]
    %v1064 = vld [vmem:[#allocation8 + $0x2e8] sm:$0xff]
    %v1065 = vld [vmem:[#allocation8 + $0x2f0] sm:$0xff]
    %v1066 = vld [vmem:[#allocation8 + $0x2f8] sm:$0xff]
    %v1067 = vld [vmem:[#allocation8 + $0x300] sm:$0xff]
    %v1068 = vld [vmem:[#allocation8 + $0x308] sm:$0xff]
    %v1069 = vld [vmem:[#allocation8 + $0x310] sm:$0xff]
    %v1070 = vld [vmem:[#allocation8 + $0x318] sm:$0xff]
    %v1071 = vld [vmem:[#allocation8 + $0x320] sm:$0xff]
    %v1072 = vld [vmem:[#allocation8 + $0x328] sm:$0xff]
    %v1073 = vld [vmem:[#allocation8 + $0x330] sm:$0xff]
    %v1074 = vld [vmem:[#allocation8 + $0x338] sm:$0xff]
    %v1075 = vld [vmem:[#allocation8 + $0x340] sm:$0xff]
    %v1076 = vld [vmem:[#allocation8 + $0x348] sm:$0xff]
    %v1077 = vld [vmem:[#allocation8 + $0x350] sm:$0xff]
    %v1078 = vld [vmem:[#allocation8 + $0x358] sm:$0xff]
    %v1079 = vld [vmem:[#allocation8 + $0x360] sm:$0xff]
    %v1080 = vld [vmem:[#allocation8 + $0x368] sm:$0xff]
    %v1081 = vld [vmem:[#allocation8 + $0x370] sm:$0xff]
    %v1082 = vld [vmem:[#allocation8 + $0x378] sm:$0xff]
    %v1083 = vld [vmem:[#allocation8 + $0x380] sm:$0xff]
    %v1084 = vld [vmem:[#allocation8 + $0x388] sm:$0xff]
    %v1085 = vld [vmem:[#allocation8 + $0x390] sm:$0xff]
    %v1086 = vld [vmem:[#allocation8 + $0x398] sm:$0xff]
    %v1087 = vld [vmem:[#allocation8 + $0x3a0] sm:$0xff]
    %v1088 = vld [vmem:[#allocation8 + $0x3a8] sm:$0xff]
    %v1089 = vld [vmem:[#allocation8 + $0x3b0] sm:$0xff]
    %v1090 = vld [vmem:[#allocation8 + $0x3b8] sm:$0xff]
    %v1091 = vld [vmem:[#allocation8 + $0x3c0] sm:$0xff]
    %v1092 = vld [vmem:[#allocation8 + $0x3c8] sm:$0xff]
    %v1093 = vld [vmem:[#allocation8 + $0x3d0] sm:$0xff]
    %v1094 = vld [vmem:[#allocation8 + $0x3d8] sm:$0xff]
    %v1095 = vld [vmem:[#allocation8 + $0x3e0] sm:$0xff]
    %v1096 = vld [vmem:[#allocation8 + $0x3e8] sm:$0xff]
    %v1097 = vld [vmem:[#allocation8 + $0x3f0] sm:$0xff]
    %v1098 = vld [vmem:[#allocation8 + $0x3f8] sm:$0xff]
    %v1099 = vld [vmem:[%s7] sm:$0xff]
    %v1101 = vlaneseq
    %v1102 = vshrl.u32 %v1101, 7
    %v1103 = vsub.s32 0, %v1102
    %v1104 = vrot.slane %v1099, %v1103
    %v1105 = vlaneseq
    %v1106 = vshrl.u32 %v1105, 7
    %v1107 = vsub.s32 1, %v1106
    %v1108 = vrot.slane %v1099, %v1107
    %v1109 = vlaneseq
    %v1110 = vshrl.u32 %v1109, 7
    %v1111 = vsub.s32 2, %v1110
    %v1112 = vrot.slane %v1099, %v1111
    %v1113 = vlaneseq
    %v1114 = vshrl.u32 %v1113, 7
    %v1115 = vsub.s32 3, %v1114
    %v1116 = vrot.slane %v1099, %v1115
    %v1117 = vlaneseq
    %v1118 = vshrl.u32 %v1117, 7
    %v1119 = vsub.s32 4, %v1118
    %v1120 = vrot.slane %v1099, %v1119
    %v1121 = vlaneseq
    %v1122 = vshrl.u32 %v1121, 7
    %v1123 = vsub.s32 5, %v1122
    %v1124 = vrot.slane %v1099, %v1123
    %v1125 = vlaneseq
    %v1126 = vshrl.u32 %v1125, 7
    %v1127 = vsub.s32 6, %v1126
    %v1128 = vrot.slane %v1099, %v1127
    %v1129 = vlaneseq
    %v1130 = vshrl.u32 %v1129, 7
    %v1131 = vsub.s32 7, %v1130
    %v1132 = vrot.slane %v1099, %v1131
    %1141 = vmatprep.subr.mxu0 %v1092
    %1142 = vmatpush1.msra.mxu0 %v1091
    %1143 = vmatprep.subr.mxu0 %v1084
    %1144 = vmatpush1.msra.mxu0 %v1083
    %1145 = vmatprep.subr.mxu0 %v1076
    %1146 = vmatpush1.msra.mxu0 %v1075
    %1147 = vmatprep.subr.mxu0 %v1068
    %1148 = vmatpush1.msra.mxu0 %v1067
    %1149 = vmatprep.subr.mxu0 %v1060
    %1150 = vmatpush1.msra.mxu0 %v1059
    %1151 = vmatprep.subr.mxu0 %v1052
    %1152 = vmatpush1.msra.mxu0 %v1051
    %1153 = vmatprep.subr.mxu0 %v1044
    %1154 = vmatpush1.msra.mxu0 %v1043
    %1155 = vmatprep.subr.mxu0 %v1036
    %1156 = vmatpush1.msra.mxu0 %v1035
    %1157 = vmatprep.subr.mxu0 %v1028
    %1158 = vmatpush1.msra.mxu0 %v1027
    %1159 = vmatprep.subr.mxu0 %v1020
    %1160 = vmatpush1.msra.mxu0 %v1019
    %1161 = vmatprep.subr.mxu0 %v1012
    %1162 = vmatpush1.msra.mxu0 %v1011
    %1163 = vmatprep.subr.mxu0 %v1004
    %1164 = vmatpush1.msra.mxu0 %v1003
    %1165 = vmatprep.subr.mxu0 %v996
    %1166 = vmatpush1.msra.mxu0 %v995
    %1167 = vmatprep.subr.mxu0 %v988
    %1168 = vmatpush1.msra.mxu0 %v987
    %1169 = vmatprep.subr.mxu0 %v980
    %1170 = vmatpush1.msra.mxu0 %v979
    %1171 = vmatprep.subr.mxu0 %v972
    %1172 = vmatpush1.msra.mxu0 %v971
    %1173 = vmatprep.subr.mxu0 0.0
    %1174 = vmatpush2.msra.mxu0 0.0
    %1175 = vmatprep.subr.mxu0 0.0
    %1176 = vmatpush2.msra.mxu0 0.0
    %1177 = vmatprep.subr.mxu0 0.0
    %1178 = vmatpush2.msra.mxu0 0.0
    %1179 = vmatprep.subr.mxu0 0.0
    %1180 = vmatpush2.msra.mxu0 0.0
    %1181 = vmatprep.subr.mxu0 0.0
    %1182 = vmatpush2.msra.mxu0 0.0
    %1183 = vmatprep.subr.mxu0 0.0
    %1184 = vmatpush2.msra.mxu0 0.0
    %1185 = vmatprep.subr.mxu0 0.0
    %1186 = vmatpush2.msra.mxu0 0.0
    %1187 = vmatprep.subr.mxu0 0.0
    %1188 = vmatpush2.msra.mxu0 0.0
    %1189 = vmatprep.subr.mxu0 0.0
    %1190 = vmatpush2.msra.mxu0 0.0
    %1191 = vmatprep.subr.mxu0 0.0
    %1192 = vmatpush2.msra.mxu0 0.0
    %1193 = vmatprep.subr.mxu0 0.0
    %1194 = vmatpush2.msra.mxu0 0.0
    %1195 = vmatprep.subr.mxu0 0.0
    %1196 = vmatpush2.msra.mxu0 0.0
    %1197 = vmatprep.subr.mxu0 0.0
    %1198 = vmatpush2.msra.mxu0 0.0
    %1199 = vmatprep.subr.mxu0 0.0
    %1200 = vmatpush2.msra.mxu0 0.0
    %1201 = vmatprep.subr.mxu0 0.0
    %1202 = vmatpush2.msra.mxu0 0.0
    %1203 = vmatprep.subr.mxu0 0.0
    %1204 = vmatpush2.msra.mxu0 0.0
    %1205 = vmatprep.mubr.f32.mxu0 0.0
    %1206 = vmatmul.mubr.f32.gmra.mxu0 %v970
    %v1207 = vpop.f32.mrf.mxu0
    %v1208 = vadd.f32 %v1104, %v1207
    %v1209 = vpop.f32.mrf.mxu0
    %v1210 = vadd.f32 %v1108, %v1209
    %1211 = vdwg.mxu0
    %1212 = vmatprep.subr.mxu0 %v1094
    %1213 = vmatpush1.msra.mxu0 %v1093
    %1214 = vmatprep.subr.mxu0 %v1086
    %1215 = vmatpush1.msra.mxu0 %v1085
    %1216 = vmatprep.subr.mxu0 %v1078
    %1217 = vmatpush1.msra.mxu0 %v1077
    %1218 = vmatprep.subr.mxu0 %v1070
    %1219 = vmatpush1.msra.mxu0 %v1069
    %1220 = vmatprep.subr.mxu0 %v1062
    %1221 = vmatpush1.msra.mxu0 %v1061
    %1222 = vmatprep.subr.mxu0 %v1054
    %1223 = vmatpush1.msra.mxu0 %v1053
    %1224 = vmatprep.subr.mxu0 %v1046
    %1225 = vmatpush1.msra.mxu0 %v1045
    %1226 = vmatprep.subr.mxu0 %v1038
    %1227 = vmatpush1.msra.mxu0 %v1037
    %1228 = vmatprep.subr.mxu0 %v1030
    %1229 = vmatpush1.msra.mxu0 %v1029
    %1230 = vmatprep.subr.mxu0 %v1022
    %1231 = vmatpush1.msra.mxu0 %v1021
    %1232 = vmatprep.subr.mxu0 %v1014
    %1233 = vmatpush1.msra.mxu0 %v1013
    %1234 = vmatprep.subr.mxu0 %v1006
    %1235 = vmatpush1.msra.mxu0 %v1005
    %1236 = vmatprep.subr.mxu0 %v998
    %1237 = vmatpush1.msra.mxu0 %v997
    %1238 = vmatprep.subr.mxu0 %v990
    %1239 = vmatpush1.msra.mxu0 %v989
    %1240 = vmatprep.subr.mxu0 %v982
    %1241 = vmatpush1.msra.mxu0 %v981
    %1242 = vmatprep.subr.mxu0 %v974
    %1243 = vmatpush1.msra.mxu0 %v973
    %1244 = vmatprep.subr.mxu0 0.0
    %1245 = vmatpush2.msra.mxu0 0.0
    %1246 = vmatprep.subr.mxu0 0.0
    %1247 = vmatpush2.msra.mxu0 0.0
    %1248 = vmatprep.subr.mxu0 0.0
    %1249 = vmatpush2.msra.mxu0 0.0
    %1250 = vmatprep.subr.mxu0 0.0
    %1251 = vmatpush2.msra.mxu0 0.0
    %1252 = vmatprep.subr.mxu0 0.0
    %1253 = vmatpush2.msra.mxu0 0.0
    %1254 = vmatprep.subr.mxu0 0.0
    %1255 = vmatpush2.msra.mxu0 0.0
    %1256 = vmatprep.subr.mxu0 0.0
    %1257 = vmatpush2.msra.mxu0 0.0
    %1258 = vmatprep.subr.mxu0 0.0
    %1259 = vmatpush2.msra.mxu0 0.0
    %1260 = vmatprep.subr.mxu0 0.0
    %1261 = vmatpush2.msra.mxu0 0.0
    %1262 = vmatprep.subr.mxu0 0.0
    %1263 = vmatpush2.msra.mxu0 0.0
    %1264 = vmatprep.subr.mxu0 0.0
    %1265 = vmatpush2.msra.mxu0 0.0
    %1266 = vmatprep.subr.mxu0 0.0
    %1267 = vmatpush2.msra.mxu0 0.0
    %1268 = vmatprep.subr.mxu0 0.0
    %1269 = vmatpush2.msra.mxu0 0.0
    %1270 = vmatprep.subr.mxu0 0.0
    %1271 = vmatpush2.msra.mxu0 0.0
    %1272 = vmatprep.subr.mxu0 0.0
    %1273 = vmatpush2.msra.mxu0 0.0
    %1274 = vmatprep.subr.mxu0 0.0
    %1275 = vmatpush2.msra.mxu0 0.0
    %1276 = vmatprep.mubr.f32.mxu0 0.0
    %1277 = vmatmul.mubr.f32.gmra.mxu0 %v970
    %v1278 = vpop.f32.mrf.mxu0
    %v1279 = vadd.f32 %v1112, %v1278
    %v1280 = vpop.f32.mrf.mxu0
    %v1281 = vadd.f32 %v1116, %v1280
    %1282 = vdwg.mxu0
    %1283 = vmatprep.subr.mxu0 %v1096
    %1284 = vmatpush1.msra.mxu0 %v1095
    %1285 = vmatprep.subr.mxu0 %v1088
    %1286 = vmatpush1.msra.mxu0 %v1087
    %1287 = vmatprep.subr.mxu0 %v1080
    %1288 = vmatpush1.msra.mxu0 %v1079
    %1289 = vmatprep.subr.mxu0 %v1072
    %1290 = vmatpush1.msra.mxu0 %v1071
    %1291 = vmatprep.subr.mxu0 %v1064
    %1292 = vmatpush1.msra.mxu0 %v1063
    %1293 = vmatprep.subr.mxu0 %v1056
    %1294 = vmatpush1.msra.mxu0 %v1055
    %1295 = vmatprep.subr.mxu0 %v1048
    %1296 = vmatpush1.msra.mxu0 %v1047
    %1297 = vmatprep.subr.mxu0 %v1040
    %1298 = vmatpush1.msra.mxu0 %v1039
    %1299 = vmatprep.subr.mxu0 %v1032
    %1300 = vmatpush1.msra.mxu0 %v1031
    %1301 = vmatprep.subr.mxu0 %v1024
    %1302 = vmatpush1.msra.mxu0 %v1023
    %1303 = vmatprep.subr.mxu0 %v1016
    %1304 = vmatpush1.msra.mxu0 %v1015
    %1305 = vmatprep.subr.mxu0 %v1008
    %1306 = vmatpush1.msra.mxu0 %v1007
    %1307 = vmatprep.subr.mxu0 %v1000
    %1308 = vmatpush1.msra.mxu0 %v999
    %1309 = vmatprep.subr.mxu0 %v992
    %1310 = vmatpush1.msra.mxu0 %v991
    %1311 = vmatprep.subr.mxu0 %v984
    %1312 = vmatpush1.msra.mxu0 %v983
    %1313 = vmatprep.subr.mxu0 %v976
    %1314 = vmatpush1.msra.mxu0 %v975
    %1315 = vmatprep.subr.mxu0 0.0
    %1316 = vmatpush2.msra.mxu0 0.0
    %1317 = vmatprep.subr.mxu0 0.0
    %1318 = vmatpush2.msra.mxu0 0.0
    %1319 = vmatprep.subr.mxu0 0.0
    %1320 = vmatpush2.msra.mxu0 0.0
    %1321 = vmatprep.subr.mxu0 0.0
    %1322 = vmatpush2.msra.mxu0 0.0
    %1323 = vmatprep.subr.mxu0 0.0
    %1324 = vmatpush2.msra.mxu0 0.0
    %1325 = vmatprep.subr.mxu0 0.0
    %1326 = vmatpush2.msra.mxu0 0.0
    %1327 = vmatprep.subr.mxu0 0.0
    %1328 = vmatpush2.msra.mxu0 0.0
    %1329 = vmatprep.subr.mxu0 0.0
    %1330 = vmatpush2.msra.mxu0 0.0
    %1331 = vmatprep.subr.mxu0 0.0
    %1332 = vmatpush2.msra.mxu0 0.0
    %1333 = vmatprep.subr.mxu0 0.0
    %1334 = vmatpush2.msra.mxu0 0.0
    %1335 = vmatprep.subr.mxu0 0.0
    %1336 = vmatpush2.msra.mxu0 0.0
    %1337 = vmatprep.subr.mxu0 0.0
    %1338 = vmatpush2.msra.mxu0 0.0
    %1339 = vmatprep.subr.mxu0 0.0
    %1340 = vmatpush2.msra.mxu0 0.0
    %1341 = vmatprep.subr.mxu0 0.0
    %1342 = vmatpush2.msra.mxu0 0.0
    %1343 = vmatprep.subr.mxu0 0.0
    %1344 = vmatpush2.msra.mxu0 0.0
    %1345 = vmatprep.subr.mxu0 0.0
    %1346 = vmatpush2.msra.mxu0 0.0
    %1347 = vmatprep.mubr.f32.mxu0 0.0
    %1348 = vmatmul.mubr.f32.gmra.mxu0 %v970
    %v1349 = vpop.f32.mrf.mxu0
    %v1350 = vadd.f32 %v1120, %v1349
    %v1351 = vpop.f32.mrf.mxu0
    %v1352 = vadd.f32 %v1124, %v1351
    %1353 = vdwg.mxu0
    %1354 = vmatprep.subr.mxu0 %v1098
    %1355 = vmatpush1.msra.mxu0 %v1097
    %1356 = vmatprep.subr.mxu0 %v1090
    %1357 = vmatpush1.msra.mxu0 %v1089
    %1358 = vmatprep.subr.mxu0 %v1082
    %1359 = vmatpush1.msra.mxu0 %v1081
    %1360 = vmatprep.subr.mxu0 %v1074
    %1361 = vmatpush1.msra.mxu0 %v1073
    %1362 = vmatprep.subr.mxu0 %v1066
    %1363 = vmatpush1.msra.mxu0 %v1065
    %1364 = vmatprep.subr.mxu0 %v1058
    %1365 = vmatpush1.msra.mxu0 %v1057
    %1366 = vmatprep.subr.mxu0 %v1050
    %1367 = vmatpush1.msra.mxu0 %v1049
    %1368 = vmatprep.subr.mxu0 %v1042
    %1369 = vmatpush1.msra.mxu0 %v1041
    %1370 = vmatprep.subr.mxu0 %v1034
    %1371 = vmatpush1.msra.mxu0 %v1033
    %1372 = vmatprep.subr.mxu0 %v1026
    %1373 = vmatpush1.msra.mxu0 %v1025
    %1374 = vmatprep.subr.mxu0 %v1018
    %1375 = vmatpush1.msra.mxu0 %v1017
    %1376 = vmatprep.subr.mxu0 %v1010
    %1377 = vmatpush1.msra.mxu0 %v1009
    %1378 = vmatprep.subr.mxu0 %v1002
    %1379 = vmatpush1.msra.mxu0 %v1001
    %1380 = vmatprep.subr.mxu0 %v994
    %1381 = vmatpush1.msra.mxu0 %v993
    %1382 = vmatprep.subr.mxu0 %v986
    %1383 = vmatpush1.msra.mxu0 %v985
    %1384 = vmatprep.subr.mxu0 %v978
    %1385 = vmatpush1.msra.mxu0 %v977
    %1386 = vmatprep.subr.mxu0 0.0
    %1387 = vmatpush2.msra.mxu0 0.0
    %1388 = vmatprep.subr.mxu0 0.0
    %1389 = vmatpush2.msra.mxu0 0.0
    %1390 = vmatprep.subr.mxu0 0.0
    %1391 = vmatpush2.msra.mxu0 0.0
    %1392 = vmatprep.subr.mxu0 0.0
    %1393 = vmatpush2.msra.mxu0 0.0
    %1394 = vmatprep.subr.mxu0 0.0
    %1395 = vmatpush2.msra.mxu0 0.0
    %1396 = vmatprep.subr.mxu0 0.0
    %1397 = vmatpush2.msra.mxu0 0.0
    %1398 = vmatprep.subr.mxu0 0.0
    %1399 = vmatpush2.msra.mxu0 0.0
    %1400 = vmatprep.subr.mxu0 0.0
    %1401 = vmatpush2.msra.mxu0 0.0
    %1402 = vmatprep.subr.mxu0 0.0
    %1403 = vmatpush2.msra.mxu0 0.0
    %1404 = vmatprep.subr.mxu0 0.0
    %1405 = vmatpush2.msra.mxu0 0.0
    %1406 = vmatprep.subr.mxu0 0.0
    %1407 = vmatpush2.msra.mxu0 0.0
    %1408 = vmatprep.subr.mxu0 0.0
    %1409 = vmatpush2.msra.mxu0 0.0
    %1410 = vmatprep.subr.mxu0 0.0
    %1411 = vmatpush2.msra.mxu0 0.0
    %1412 = vmatprep.subr.mxu0 0.0
    %1413 = vmatpush2.msra.mxu0 0.0
    %1414 = vmatprep.subr.mxu0 0.0
    %1415 = vmatpush2.msra.mxu0 0.0
    %1416 = vmatprep.subr.mxu0 0.0
    %1417 = vmatpush2.msra.mxu0 0.0
    %1418 = vmatprep.mubr.f32.mxu0 0.0
    %1419 = vmatmul.mubr.f32.gmra.mxu0 %v970
    %v1420 = vpop.f32.mrf.mxu0
    %v1421 = vadd.f32 %v1128, %v1420
    %v1422 = vpop.f32.mrf.mxu0
    %v1423 = vadd.f32 %v1132, %v1422
    %1424 = vdwg.mxu0
    %v1433 = vcombine.low %v1208, %v1210
    %v1434 = vcombine.low %v1279, %v1281
    %v1436 = vunpack.c.l.s4 1983009808
    %v1437 = vunpack.c.0.s8 %v1436
    %v1438 = vlaneseq
    %v1439 = vshrl.u32 %v1438, 7
    %v1440 = vsub.s32 %v1437, %v1439
    %v1441 = vrot.slane %v1433, %v1440
    %v1443 = vunpack.c.l.s4 1983009808
    %v1444 = vunpack.c.0.s8 %v1443
    %v1445 = vlaneseq
    %v1446 = vshrl.u32 %v1445, 7
    %v1447 = vsub.s32 %v1444, %v1446
    %v1448 = vrot.slane %v1434, %v1447
    %v1449 = vcombine.low %v1441, %v1448
    %v1450 = vcombine.low %v1350, %v1352
    %v1451 = vcombine.low %v1421, %v1423
    %v1453 = vunpack.c.l.s4 1983009808
    %v1454 = vunpack.c.0.s8 %v1453
    %v1455 = vlaneseq
    %v1456 = vshrl.u32 %v1455, 7
    %v1457 = vsub.s32 %v1454, %v1456
    %v1458 = vrot.slane %v1450, %v1457
    %v1460 = vunpack.c.l.s4 1983009808
    %v1461 = vunpack.c.0.s8 %v1460
    %v1462 = vlaneseq
    %v1463 = vshrl.u32 %v1462, 7
    %v1464 = vsub.s32 %v1461, %v1463
    %v1465 = vrot.slane %v1451, %v1464
    %v1466 = vcombine.low %v1458, %v1465
    %1469 = vst [vmem:[#allocation10] sm:$0xff] %v1449
    %1470 = vst [vmem:[#allocation10 + $0x8] sm:$0xff] %v1466
    %1471 = vst [vmem:[#allocation11] sm:$0x3] %v545
    %1472 = vst [vmem:[#allocation13] sm:$0x3] %v964
    // Predicated region
    $region50: #{tpu_custom_call.1} parent=1 // pred_check
      _
    $region51: #{tpu_custom_call.1} parent=1 // pred_check_branch
      %1474 = sbr.rel (0) target = $region53
    $region52: #{tpu_custom_call.1} parent=1 // pred_region
      %s1476 = ssub.s32 256, 256
      %1477 = vsyncadd [#allocation4], %s1476
      %s1479 = sshll.u32 [#allocation10], 4
      %s1480 = int_to_ptr.vmem [resolvable:$true] %s1479
      %1482 = dma.vmem_to_hbm [thread:$0]  %s1480, 256, %s8, [#allocation4]
    $region53: #{tpu_custom_call.1} parent=1 // pred_fallthru
      _
    // Predicated region
    $region54: #{tpu_custom_call.1} parent=1 // pred_check
      _
    $region55: #{tpu_custom_call.1} parent=1 // pred_check_branch
      %1484 = sbr.rel (0) target = $region57
    $region56: #{tpu_custom_call.1} parent=1 // pred_region
      %s1486 = ssub.s32 32, 32
      %1487 = vsyncadd [#allocation12], %s1486
      %s1489 = sshll.u32 [#allocation11], 4
      %s1490 = int_to_ptr.vmem [resolvable:$true] %s1489
      %1492 = dma.vmem_to_hbm [thread:$0]  %s1490, 32, %s9, [#allocation12]
    $region57: #{tpu_custom_call.1} parent=1 // pred_fallthru
      _
    // Predicated region
    $region58: #{tpu_custom_call.1} parent=1 // pred_check
      _
    $region59: #{tpu_custom_call.1} parent=1 // pred_check_branch
      %1494 = sbr.rel (0) target = $region61
    $region60: #{tpu_custom_call.1} parent=1 // pred_region
      %s1496 = ssub.s32 32, 32
      %1497 = vsyncadd [#allocation12], %s1496
      %s1499 = sshll.u32 [#allocation13], 4
      %s1500 = int_to_ptr.vmem [resolvable:$true] %s1499
      %1502 = dma.vmem_to_hbm [thread:$0]  %s1500, 32, %s10, [#allocation12]
    $region61: #{tpu_custom_call.1} parent=1 // pred_fallthru
      _
    // Predicated region
    $region62: #{tpu_custom_call.1} parent=1 // pred_check
      _
    $region63: #{tpu_custom_call.1} parent=1 // pred_check_branch
      %1504 = sbr.rel (0) target = $region65
    $region64: #{tpu_custom_call.1} parent=1 // pred_region
      %1505 = dma.done [#allocation4], 256
    $region65: #{tpu_custom_call.1} parent=1 // pred_fallthru
      _
    // Predicated region
    $region66: #{tpu_custom_call.1} parent=1 // pred_check
      _
    $region67: #{tpu_custom_call.1} parent=1 // pred_check_branch
      %1507 = sbr.rel (0) target = $region69
    $region68: #{tpu_custom_call.1} parent=1 // pred_region
      %1508 = dma.done [#allocation12], 32
    $region69: #{tpu_custom_call.1} parent=1 // pred_fallthru
      _
    // Predicated region
    $region70: #{tpu_custom_call.1} parent=1 // pred_check
      _
    $region71: #{tpu_custom_call.1} parent=1 // pred_check_branch
      %1510 = sbr.rel (0) target = $region73
    $region72: #{tpu_custom_call.1} parent=1 // pred_region
      %1511 = dma.done [#allocation12], 32
    $region73: #{tpu_custom_call.1} parent=1 // pred_fallthru
      _
    %1512 = vsyncpa [#allocation3], 1
    %1513 = vsyncpa [#allocation6], 1
    %1514 = vsyncpa [#allocation9], 1
    %1515 = vsyncpa [#allocation4], 1
    %1516 = vsyncpa [#allocation12], 1

</llo_original>
